<compile_context>
chip_gen: v7x
topology: tpu7x:2x2x1
jax: 0.10.0
libtpu: 0.0.40
codegen_flags: <defaults>
</compile_context>

<pallas_src>
import jax
import jax.numpy as jnp
from jax.experimental import pallas as pl
from jax.experimental.pallas import tpu as pltpu


def _round_up(n: int, m: int) -> int:
    return ((n + m - 1) // m) * m


def _cdiv(a: int, b: int) -> int:
    return -(-a // b)


def _vmem_capacity_bytes() -> int:
    """Physical per-core VMEM; conservative (v7x-sized) fallback if unknown."""
    try:
        info = pltpu.get_tpu_info()
        cap = getattr(info, "vmem_capacity_bytes", None)
        if cap:
            return int(cap)
    except Exception:
        pass
    return 64 * 1024 * 1024


def ae_kernel(x_ref,
              w1_ref, b1_ref, w2_ref, b2_ref,   # encoder params (padded)
              w3_ref, b3_ref, w4_ref, b4_ref,   # decoder params (padded)
              recs_ref, lat_ref):
    # Cast activations to bf16 right before each MXU dot; accumulate fp32;
    # bias-add / ReLU in fp32 (v5e VPU has no native bf16).
    xb = x_ref[...].astype(jnp.bfloat16)

    # ---- Encoder ----
    h1 = jnp.dot(xb, w1_ref[...], preferred_element_type=jnp.float32) + b1_ref[...]
    h1 = jnp.maximum(h1, 0.0)
    lat = jnp.dot(h1.astype(jnp.bfloat16), w2_ref[...],
                  preferred_element_type=jnp.float32) + b2_ref[...]

    # ---- Decoder ----
    h2 = jnp.dot(lat.astype(jnp.bfloat16), w3_ref[...],
                 preferred_element_type=jnp.float32) + b3_ref[...]
    h2 = jnp.maximum(h2, 0.0)
    recs = jnp.dot(h2.astype(jnp.bfloat16), w4_ref[...],
                   preferred_element_type=jnp.float32) + b4_ref[...]

    lat_ref[...] = lat.astype(lat_ref.dtype)
    recs_ref[...] = recs.astype(recs_ref.dtype)


def prepare_params(params, d_in: int):
    """Pad to lane width (128) and cast weights to bf16 ONCE, outside jit."""
    (w1, b1, w2, b2, w3, b3, w4, b4) = params
    H, L = w1.shape[1], w2.shape[1]
    Dp, Hp, Lp = _round_up(d_in, 128), _round_up(H, 128), _round_up(L, 128)

    def pad2(a, rows, cols):
        return jnp.pad(a, ((0, rows - a.shape[0]), (0, cols - a.shape[1])))

    padded = (
        pad2(w1, Dp, Hp).astype(jnp.bfloat16), pad2(b1, 1, Hp).astype(jnp.float32),
        pad2(w2, Hp, Lp).astype(jnp.bfloat16), pad2(b2, 1, Lp).astype(jnp.float32),
        pad2(w3, Lp, Hp).astype(jnp.bfloat16), pad2(b3, 1, Hp).astype(jnp.float32),
        pad2(w4, Hp, Dp).astype(jnp.bfloat16), pad2(b4, 1, Dp).astype(jnp.float32),
    )
    dims = (d_in, H, L)  # static python ints for un-padding the outputs
    return padded, dims


def ae_forward(x, padded_params, dims, *, tb: int = 1024,
               single_buffer_weights: bool = True):
    """Pallas implementation of AE_Module.forward: returns (recs, latents)."""
    (w1p, b1p, w2p, b2p, w3p, b3p, w4p, b4p) = padded_params
    D_in, H, L = dims
    B = x.shape[0]
    Dp, Hp = w1p.shape
    Lp = w2p.shape[1]

    # Lane-pad x's feature dim (zero columns hit zero weight rows -> exact math).
    if x.shape[1] != Dp:
        x = jnp.pad(x, ((0, 0), (0, Dp - x.shape[1])))

    # ---- Generation-aware tile sizing --------------------------------------
    x_bytes = x.dtype.itemsize
    out_bytes = 4
    wbuf = 1 if single_buffer_weights else 2
    weight_bytes = wbuf * (2 * (Dp * Hp + Hp * Lp + Lp * Hp + Hp * Dp)
                           + 4 * (Hp + Lp + Hp + Dp))
    # Per batch-row VMEM: double-buffered x/recs/latents tiles + activation
    # temporaries (h1/h2/lat/recs in f32 and their bf16 casts).
    per_row = (2 * Dp * x_bytes
               + 2 * Dp * out_bytes + 2 * Lp * out_bytes
               + 6 * Dp + 12 * Hp + 6 * Lp)

    cap = _vmem_capacity_bytes()
    big_vmem = cap >= (100 << 20)              # v5e / v6e (128 MiB) vs v7x (64 MiB)
    budget = (80 << 20) if big_vmem else (40 << 20)
    avail = max(budget - weight_bytes, per_row * 8)
    tb_max = max((avail // per_row) // 8 * 8, 8)
    tb_cap = max(min(tb, tb_max, 4096), 8)

    num_tiles = max(_cdiv(B, tb_cap), 1)
    if B >= 16:
        num_tiles = max(num_tiles, 2)          # >=2 grid steps -> v7x megacore split
    TB = _round_up(_cdiv(B, num_tiles), 8)     # bounds padding to <8 rows/tile
    Bp = TB * num_tiles
    if Bp != B:
        x = jnp.pad(x, ((0, Bp - B), (0, 0)))
    grid = (num_tiles,)

    vmem_limit = int(min(cap - (16 << 20), budget + (12 << 20)))
    vmem_limit = max(vmem_limit, 32 << 20)

    # ---- Specs --------------------------------------------------------------
    def const_spec(a):
        if single_buffer_weights:
            return pl.BlockSpec(a.shape, lambda i: (0, 0),
                                pipeline_mode=pl.Buffered(1))
        return pl.BlockSpec(a.shape, lambda i: (0, 0))

    flops = 2 * Bp * (Dp * Hp + Hp * Lp + Lp * Hp + Hp * Dp)
    bytes_accessed = (Bp * Dp * x_bytes
                      + Bp * (Dp + Lp) * out_bytes
                      + weight_bytes // wbuf)

    recs, latents = pl.pallas_call(
        ae_kernel,
        grid=grid,
        out_shape=(
            jax.ShapeDtypeStruct((Bp, Dp), jnp.float32),   # recs (lane-padded)
            jax.ShapeDtypeStruct((Bp, Lp), jnp.float32),   # latents (lane-padded)
        ),
        in_specs=[
            pl.BlockSpec((TB, Dp), lambda i: (i, 0)),      # x tile
            const_spec(w1p), const_spec(b1p),
            const_spec(w2p), const_spec(b2p),
            const_spec(w3p), const_spec(b3p),
            const_spec(w4p), const_spec(b4p),
        ],
        out_specs=(
            pl.BlockSpec((TB, Dp), lambda i: (i, 0)),
            pl.BlockSpec((TB, Lp), lambda i: (i, 0)),
        ),
        compiler_params=pltpu.CompilerParams(
            dimension_semantics=("parallel",),
            vmem_limit_bytes=vmem_limit,
        ),
        cost_estimate=pl.CostEstimate(
            flops=flops, transcendentals=0, bytes_accessed=bytes_accessed),
    )(x, w1p, b1p, w2p, b2p, w3p, b3p, w4p, b4p)

    # Strip batch / lane padding back off (no-ops when already aligned).
    return recs[:B, :D_in], latents[:B, :L]


def init_params(key, d_in, hidden, latent):
    """Deterministic synthetic parameter init (shapes follow the MLP AE)."""
    ks = jax.random.split(key, 8)
    scale = 0.05

    def lin(kw, kb, fan_in, fan_out):
        w = scale * jax.random.normal(kw, (fan_in, fan_out), dtype=jnp.float32)
        b = scale * jax.random.normal(kb, (1, fan_out), dtype=jnp.float32)
        return w, b

    w1, b1 = lin(ks[0], ks[1], d_in, hidden)     # E layer 1
    w2, b2 = lin(ks[2], ks[3], hidden, latent)   # E layer 2
    w3, b3 = lin(ks[4], ks[5], latent, hidden)   # D layer 1
    w4, b4 = lin(ks[6], ks[7], hidden, d_in)     # D layer 2
    return (w1, b1, w2, b2, w3, b3, w4, b4)


def ae_reference(x, params):
    """Pure-JAX fp32 reference for correctness check."""
    (w1, b1, w2, b2, w3, b3, w4, b4) = params
    h1 = jnp.maximum(x @ w1 + b1, 0.0)
    lat = h1 @ w2 + b2
    h2 = jnp.maximum(lat @ w3 + b3, 0.0)
    recs = h2 @ w4 + b4
    return recs, lat


if __name__ == "__main__":
    B, D_IN, HIDDEN, LATENT = 256, 128, 64, 32
    TB = 128  # 2-step grid to exercise pipelining / megacore split in the test

    key = jax.random.PRNGKey(0)
    k_x, k_p = jax.random.split(key)
    x = jax.random.normal(k_x, (B, D_IN), dtype=jnp.float32)
    params = init_params(k_p, D_IN, HIDDEN, LATENT)

    # Pad + cast weights exactly once, outside the per-call path.
    prepped, dims = prepare_params(params, D_IN)

    def run(single_buffer: bool):
        fwd = jax.jit(lambda xx, pp: ae_forward(
            xx, pp, dims, tb=TB, single_buffer_weights=single_buffer))
        out = fwd(x, prepped)
        jax.block_until_ready(out)
        return out

    try:
        recs, latents = run(True)
    except Exception:
        # Fallback if this JAX build rejects single-buffered constant blocks.
        recs, latents = run(False)

    recs_ref, lat_ref = ae_reference(x, params)
    assert recs.shape == (B, D_IN) and latents.shape == (B, LATENT)
    # bf16 matmul operands with fp32 accumulation -> bf16-level tolerance.
    assert jnp.allclose(recs, recs_ref, atol=3e-2, rtol=3e-2)
    assert jnp.allclose(latents, lat_ref, atol=3e-2, rtol=3e-2)

    print("KERNEL_OK")
</pallas_src>

<mosaic_0001>
module attributes {stable_mosaic.version = 11 : i64} {
  func.func @ae_kernel(%arg0: i32, %arg1: memref<128x128xf32, #tpu.memory_space<vmem>>, %arg2: memref<128x128xbf16, #tpu.memory_space<vmem>>, %arg3: memref<1x128xf32, #tpu.memory_space<vmem>>, %arg4: memref<128x128xbf16, #tpu.memory_space<vmem>>, %arg5: memref<1x128xf32, #tpu.memory_space<vmem>>, %arg6: memref<128x128xbf16, #tpu.memory_space<vmem>>, %arg7: memref<1x128xf32, #tpu.memory_space<vmem>>, %arg8: memref<128x128xbf16, #tpu.memory_space<vmem>>, %arg9: memref<1x128xf32, #tpu.memory_space<vmem>>, %arg10: memref<128x128xf32, #tpu.memory_space<vmem>>, %arg11: memref<128x128xf32, #tpu.memory_space<vmem>>) attributes {dimension_semantics = [#tpu.dimension_semantics<parallel>], iteration_bounds = array<i64: 2>, scalar_prefetch = 0 : i64, scratch_operands = 0 : i64, tpu.core_type = #tpu.core_type<tc>, window_params = [{transform_indices = @transform_0, window_bounds = array<i64: 128, 128>}, {pipeline_mode = #tpu.pipeline_mode<synchronous>, transform_indices = @transform_1, window_bounds = array<i64: 128, 128>}, {pipeline_mode = #tpu.pipeline_mode<synchronous>, transform_indices = @transform_2, window_bounds = array<i64: 1, 128>}, {pipeline_mode = #tpu.pipeline_mode<synchronous>, transform_indices = @transform_3, window_bounds = array<i64: 128, 128>}, {pipeline_mode = #tpu.pipeline_mode<synchronous>, transform_indices = @transform_4, window_bounds = array<i64: 1, 128>}, {pipeline_mode = #tpu.pipeline_mode<synchronous>, transform_indices = @transform_5, window_bounds = array<i64: 128, 128>}, {pipeline_mode = #tpu.pipeline_mode<synchronous>, transform_indices = @transform_6, window_bounds = array<i64: 1, 128>}, {pipeline_mode = #tpu.pipeline_mode<synchronous>, transform_indices = @transform_7, window_bounds = array<i64: 128, 128>}, {pipeline_mode = #tpu.pipeline_mode<synchronous>, transform_indices = @transform_8, window_bounds = array<i64: 1, 128>}, {transform_indices = @transform_9, window_bounds = array<i64: 128, 128>}, {transform_indices = @transform_10, window_bounds = array<i64: 128, 128>}]} {
    %c0 = arith.constant 0 : index
    %c0_0 = arith.constant 0 : index
    %0 = vector.load %arg1[%c0, %c0_0] : memref<128x128xf32, #tpu.memory_space<vmem>>, vector<128x128xf32>
    %1 = arith.truncf %0 : vector<128x128xf32> to vector<128x128xbf16>
    %c0_1 = arith.constant 0 : index
    %c0_2 = arith.constant 0 : index
    %2 = vector.load %arg2[%c0_1, %c0_2] : memref<128x128xbf16, #tpu.memory_space<vmem>>, vector<128x128xbf16>
    %cst = arith.constant dense<0.000000e+00> : vector<128x128xf32>
    %3 = tpu.matmul %1, %2, %cst {dimension_numbers = #tpu.dot_dimension_numbers<[1], [0], [0], [1], [0, 0, 1, 1], [], []>} : vector<128x128xbf16>, vector<128x128xbf16>, vector<128x128xf32> -> vector<128x128xf32>
    %c0_3 = arith.constant 0 : index
    %c0_4 = arith.constant 0 : index
    %4 = vector.load %arg3[%c0_3, %c0_4] : memref<1x128xf32, #tpu.memory_space<vmem>>, vector<1x128xf32>
    %5 = vector.broadcast %4 : vector<1x128xf32> to vector<128x128xf32>
    %6 = arith.addf %3, %5 : vector<128x128xf32>
    %cst_5 = arith.constant 0.000000e+00 : f32
    %7 = vector.broadcast %cst_5 : f32 to vector<128x128xf32>
    %8 = arith.maximumf %6, %7 : vector<128x128xf32>
    %9 = arith.truncf %8 : vector<128x128xf32> to vector<128x128xbf16>
    %c0_6 = arith.constant 0 : index
    %c0_7 = arith.constant 0 : index
    %10 = vector.load %arg4[%c0_6, %c0_7] : memref<128x128xbf16, #tpu.memory_space<vmem>>, vector<128x128xbf16>
    %cst_8 = arith.constant dense<0.000000e+00> : vector<128x128xf32>
    %11 = tpu.matmul %9, %10, %cst_8 {dimension_numbers = #tpu.dot_dimension_numbers<[1], [0], [0], [1], [0, 0, 1, 1], [], []>} : vector<128x128xbf16>, vector<128x128xbf16>, vector<128x128xf32> -> vector<128x128xf32>
    %c0_9 = arith.constant 0 : index
    %c0_10 = arith.constant 0 : index
    %12 = vector.load %arg5[%c0_9, %c0_10] : memref<1x128xf32, #tpu.memory_space<vmem>>, vector<1x128xf32>
    %13 = vector.broadcast %12 : vector<1x128xf32> to vector<128x128xf32>
    %14 = arith.addf %11, %13 : vector<128x128xf32>
    %15 = arith.truncf %14 : vector<128x128xf32> to vector<128x128xbf16>
    %c0_11 = arith.constant 0 : index
    %c0_12 = arith.constant 0 : index
    %16 = vector.load %arg6[%c0_11, %c0_12] : memref<128x128xbf16, #tpu.memory_space<vmem>>, vector<128x128xbf16>
    %cst_13 = arith.constant dense<0.000000e+00> : vector<128x128xf32>
    %17 = tpu.matmul %15, %16, %cst_13 {dimension_numbers = #tpu.dot_dimension_numbers<[1], [0], [0], [1], [0, 0, 1, 1], [], []>} : vector<128x128xbf16>, vector<128x128xbf16>, vector<128x128xf32> -> vector<128x128xf32>
    %c0_14 = arith.constant 0 : index
    %c0_15 = arith.constant 0 : index
    %18 = vector.load %arg7[%c0_14, %c0_15] : memref<1x128xf32, #tpu.memory_space<vmem>>, vector<1x128xf32>
    %19 = vector.broadcast %18 : vector<1x128xf32> to vector<128x128xf32>
    %20 = arith.addf %17, %19 : vector<128x128xf32>
    %cst_16 = arith.constant 0.000000e+00 : f32
    %21 = vector.broadcast %cst_16 : f32 to vector<128x128xf32>
    %22 = arith.maximumf %20, %21 : vector<128x128xf32>
    %23 = arith.truncf %22 : vector<128x128xf32> to vector<128x128xbf16>
    %c0_17 = arith.constant 0 : index
    %c0_18 = arith.constant 0 : index
    %24 = vector.load %arg8[%c0_17, %c0_18] : memref<128x128xbf16, #tpu.memory_space<vmem>>, vector<128x128xbf16>
    %cst_19 = arith.constant dense<0.000000e+00> : vector<128x128xf32>
    %25 = tpu.matmul %23, %24, %cst_19 {dimension_numbers = #tpu.dot_dimension_numbers<[1], [0], [0], [1], [0, 0, 1, 1], [], []>} : vector<128x128xbf16>, vector<128x128xbf16>, vector<128x128xf32> -> vector<128x128xf32>
    %c0_20 = arith.constant 0 : index
    %c0_21 = arith.constant 0 : index
    %26 = vector.load %arg9[%c0_20, %c0_21] : memref<1x128xf32, #tpu.memory_space<vmem>>, vector<1x128xf32>
    %27 = vector.broadcast %26 : vector<1x128xf32> to vector<128x128xf32>
    %28 = arith.addf %25, %27 : vector<128x128xf32>
    %c0_22 = arith.constant 0 : index
    %c0_23 = arith.constant 0 : index
    %29 = vector.load %arg11[%c0_22, %c0_23] : memref<128x128xf32, #tpu.memory_space<vmem>>, vector<128x128xf32>
    tpu.vector_store %arg11[%c0_22, %c0_23], %14 {strides = array<i32>} : memref<128x128xf32, #tpu.memory_space<vmem>>, vector<128x128xf32>,
    %c0_24 = arith.constant 0 : index
    %c0_25 = arith.constant 0 : index
    %30 = vector.load %arg10[%c0_24, %c0_25] : memref<128x128xf32, #tpu.memory_space<vmem>>, vector<128x128xf32>
    tpu.vector_store %arg10[%c0_24, %c0_25], %28 {strides = array<i32>} : memref<128x128xf32, #tpu.memory_space<vmem>>, vector<128x128xf32>,
    return
  }
  func.func @transform_0(%arg0: i32) -> (i32, i32) {
    %c0_i32 = arith.constant 0 : i32
    %c0_i32_0 = arith.constant 0 : i32
    return %arg0, %c0_i32 : i32, i32
  }
  func.func @transform_1(%arg0: i32) -> (i32, i32) {
    %c0_i32 = arith.constant 0 : i32
    %c0_i32_0 = arith.constant 0 : i32
    %c0_i32_1 = arith.constant 0 : i32
    return %c0_i32, %c0_i32_0 : i32, i32
  }
  func.func @transform_2(%arg0: i32) -> (i32, i32) {
    %c0_i32 = arith.constant 0 : i32
    %c0_i32_0 = arith.constant 0 : i32
    %c0_i32_1 = arith.constant 0 : i32
    return %c0_i32, %c0_i32_0 : i32, i32
  }
  func.func @transform_3(%arg0: i32) -> (i32, i32) {
    %c0_i32 = arith.constant 0 : i32
    %c0_i32_0 = arith.constant 0 : i32
    %c0_i32_1 = arith.constant 0 : i32
    return %c0_i32, %c0_i32_0 : i32, i32
  }
  func.func @transform_4(%arg0: i32) -> (i32, i32) {
    %c0_i32 = arith.constant 0 : i32
    %c0_i32_0 = arith.constant 0 : i32
    %c0_i32_1 = arith.constant 0 : i32
    return %c0_i32, %c0_i32_0 : i32, i32
  }
  func.func @transform_5(%arg0: i32) -> (i32, i32) {
    %c0_i32 = arith.constant 0 : i32
    %c0_i32_0 = arith.constant 0 : i32
    %c0_i32_1 = arith.constant 0 : i32
    return %c0_i32, %c0_i32_0 : i32, i32
  }
  func.func @transform_6(%arg0: i32) -> (i32, i32) {
    %c0_i32 = arith.constant 0 : i32
    %c0_i32_0 = arith.constant 0 : i32
    %c0_i32_1 = arith.constant 0 : i32
    return %c0_i32, %c0_i32_0 : i32, i32
  }
  func.func @transform_7(%arg0: i32) -> (i32, i32) {
    %c0_i32 = arith.constant 0 : i32
    %c0_i32_0 = arith.constant 0 : i32
    %c0_i32_1 = arith.constant 0 : i32
    return %c0_i32, %c0_i32_0 : i32, i32
  }
  func.func @transform_8(%arg0: i32) -> (i32, i32) {
    %c0_i32 = arith.constant 0 : i32
    %c0_i32_0 = arith.constant 0 : i32
    %c0_i32_1 = arith.constant 0 : i32
    return %c0_i32, %c0_i32_0 : i32, i32
  }
  func.func @transform_9(%arg0: i32) -> (i32, i32) {
    %c0_i32 = arith.constant 0 : i32
    %c0_i32_0 = arith.constant 0 : i32
    return %arg0, %c0_i32 : i32, i32
  }
  func.func @transform_10(%arg0: i32) -> (i32, i32) {
    %c0_i32 = arith.constant 0 : i32
    %c0_i32_0 = arith.constant 0 : i32
    return %arg0, %c0_i32 : i32, i32
  }
}

module attributes {stable_mosaic.version = 11 : i64} {
  func.func @ae_kernel(%arg0: i32, %arg1: memref<128x128xf32, #tpu.memory_space<vmem>>, %arg2: memref<128x128xbf16, #tpu.memory_space<vmem>>, %arg3: memref<1x128xf32, #tpu.memory_space<vmem>>, %arg4: memref<128x128xbf16, #tpu.memory_space<vmem>>, %arg5: memref<1x128xf32, #tpu.memory_space<vmem>>, %arg6: memref<128x128xbf16, #tpu.memory_space<vmem>>, %arg7: memref<1x128xf32, #tpu.memory_space<vmem>>, %arg8: memref<128x128xbf16, #tpu.memory_space<vmem>>, %arg9: memref<1x128xf32, #tpu.memory_space<vmem>>, %arg10: memref<128x128xf32, #tpu.memory_space<vmem>>, %arg11: memref<128x128xf32, #tpu.memory_space<vmem>>) attributes {dimension_semantics = [#tpu.dimension_semantics<parallel>], iteration_bounds = array<i64: 2>, scalar_prefetch = 0 : i64, scratch_operands = 0 : i64, tpu.core_type = #tpu.core_type<tc>, window_params = [{transform_indices = @transform_0, window_bounds = array<i64: 128, 128>}, {pipeline_mode = #tpu.pipeline_mode<synchronous>, transform_indices = @transform_1, window_bounds = array<i64: 128, 128>}, {pipeline_mode = #tpu.pipeline_mode<synchronous>, transform_indices = @transform_2, window_bounds = array<i64: 1, 128>}, {pipeline_mode = #tpu.pipeline_mode<synchronous>, transform_indices = @transform_3, window_bounds = array<i64: 128, 128>}, {pipeline_mode = #tpu.pipeline_mode<synchronous>, transform_indices = @transform_4, window_bounds = array<i64: 1, 128>}, {pipeline_mode = #tpu.pipeline_mode<synchronous>, transform_indices = @transform_5, window_bounds = array<i64: 128, 128>}, {pipeline_mode = #tpu.pipeline_mode<synchronous>, transform_indices = @transform_6, window_bounds = array<i64: 1, 128>}, {pipeline_mode = #tpu.pipeline_mode<synchronous>, transform_indices = @transform_7, window_bounds = array<i64: 128, 128>}, {pipeline_mode = #tpu.pipeline_mode<synchronous>, transform_indices = @transform_8, window_bounds = array<i64: 1, 128>}, {transform_indices = @transform_9, window_bounds = array<i64: 128, 128>}, {transform_indices = @transform_10, window_bounds = array<i64: 128, 128>}]} {
    %c0 = arith.constant 0 : index
    %c0_0 = arith.constant 0 : index
    %0 = vector.load %arg1[%c0, %c0_0] : memref<128x128xf32, #tpu.memory_space<vmem>>, vector<128x128xf32>
    %1 = arith.truncf %0 : vector<128x128xf32> to vector<128x128xbf16>
    %c0_1 = arith.constant 0 : index
    %c0_2 = arith.constant 0 : index
    %2 = vector.load %arg2[%c0_1, %c0_2] : memref<128x128xbf16, #tpu.memory_space<vmem>>, vector<128x128xbf16>
    %cst = arith.constant dense<0.000000e+00> : vector<128x128xf32>
    %3 = tpu.matmul %1, %2, %cst {dimension_numbers = #tpu.dot_dimension_numbers<[1], [0], [0], [1], [0, 0, 1, 1], [], []>} : vector<128x128xbf16>, vector<128x128xbf16>, vector<128x128xf32> -> vector<128x128xf32>
    %c0_3 = arith.constant 0 : index
    %c0_4 = arith.constant 0 : index
    %4 = vector.load %arg3[%c0_3, %c0_4] : memref<1x128xf32, #tpu.memory_space<vmem>>, vector<1x128xf32>
    %5 = vector.broadcast %4 : vector<1x128xf32> to vector<128x128xf32>
    %6 = arith.addf %3, %5 : vector<128x128xf32>
    %cst_5 = arith.constant 0.000000e+00 : f32
    %7 = vector.broadcast %cst_5 : f32 to vector<128x128xf32>
    %8 = arith.maximumf %6, %7 : vector<128x128xf32>
    %9 = arith.truncf %8 : vector<128x128xf32> to vector<128x128xbf16>
    %c0_6 = arith.constant 0 : index
    %c0_7 = arith.constant 0 : index
    %10 = vector.load %arg4[%c0_6, %c0_7] : memref<128x128xbf16, #tpu.memory_space<vmem>>, vector<128x128xbf16>
    %cst_8 = arith.constant dense<0.000000e+00> : vector<128x128xf32>
    %11 = tpu.matmul %9, %10, %cst_8 {dimension_numbers = #tpu.dot_dimension_numbers<[1], [0], [0], [1], [0, 0, 1, 1], [], []>} : vector<128x128xbf16>, vector<128x128xbf16>, vector<128x128xf32> -> vector<128x128xf32>
    %c0_9 = arith.constant 0 : index
    %c0_10 = arith.constant 0 : index
    %12 = vector.load %arg5[%c0_9, %c0_10] : memref<1x128xf32, #tpu.memory_space<vmem>>, vector<1x128xf32>
    %13 = vector.broadcast %12 : vector<1x128xf32> to vector<128x128xf32>
    %14 = arith.addf %11, %13 : vector<128x128xf32>
    %15 = arith.truncf %14 : vector<128x128xf32> to vector<128x128xbf16>
    %c0_11 = arith.constant 0 : index
    %c0_12 = arith.constant 0 : index
    %16 = vector.load %arg6[%c0_11, %c0_12] : memref<128x128xbf16, #tpu.memory_space<vmem>>, vector<128x128xbf16>
    %cst_13 = arith.constant dense<0.000000e+00> : vector<128x128xf32>
    %17 = tpu.matmul %15, %16, %cst_13 {dimension_numbers = #tpu.dot_dimension_numbers<[1], [0], [0], [1], [0, 0, 1, 1], [], []>} : vector<128x128xbf16>, vector<128x128xbf16>, vector<128x128xf32> -> vector<128x128xf32>
    %c0_14 = arith.constant 0 : index
    %c0_15 = arith.constant 0 : index
    %18 = vector.load %arg7[%c0_14, %c0_15] : memref<1x128xf32, #tpu.memory_space<vmem>>, vector<1x128xf32>
    %19 = vector.broadcast %18 : vector<1x128xf32> to vector<128x128xf32>
    %20 = arith.addf %17, %19 : vector<128x128xf32>
    %cst_16 = arith.constant 0.000000e+00 : f32
    %21 = vector.broadcast %cst_16 : f32 to vector<128x128xf32>
    %22 = arith.maximumf %20, %21 : vector<128x128xf32>
    %23 = arith.truncf %22 : vector<128x128xf32> to vector<128x128xbf16>
    %c0_17 = arith.constant 0 : index
    %c0_18 = arith.constant 0 : index
    %24 = vector.load %arg8[%c0_17, %c0_18] : memref<128x128xbf16, #tpu.memory_space<vmem>>, vector<128x128xbf16>
    %cst_19 = arith.constant dense<0.000000e+00> : vector<128x128xf32>
    %25 = tpu.matmul %23, %24, %cst_19 {dimension_numbers = #tpu.dot_dimension_numbers<[1], [0], [0], [1], [0, 0, 1, 1], [], []>} : vector<128x128xbf16>, vector<128x128xbf16>, vector<128x128xf32> -> vector<128x128xf32>
    %c0_20 = arith.constant 0 : index
    %c0_21 = arith.constant 0 : index
    %26 = vector.load %arg9[%c0_20, %c0_21] : memref<1x128xf32, #tpu.memory_space<vmem>>, vector<1x128xf32>
    %27 = vector.broadcast %26 : vector<1x128xf32> to vector<128x128xf32>
    %28 = arith.addf %25, %27 : vector<128x128xf32>
    %c0_22 = arith.constant 0 : index
    %c0_23 = arith.constant 0 : index
    %29 = vector.load %arg11[%c0_22, %c0_23] : memref<128x128xf32, #tpu.memory_space<vmem>>, vector<128x128xf32>
    tpu.vector_store %arg11[%c0_22, %c0_23], %14 {strides = array<i32>} : memref<128x128xf32, #tpu.memory_space<vmem>>, vector<128x128xf32>,
    %c0_24 = arith.constant 0 : index
    %c0_25 = arith.constant 0 : index
    %30 = vector.load %arg10[%c0_24, %c0_25] : memref<128x128xf32, #tpu.memory_space<vmem>>, vector<128x128xf32>
    tpu.vector_store %arg10[%c0_24, %c0_25], %28 {strides = array<i32>} : memref<128x128xf32, #tpu.memory_space<vmem>>, vector<128x128xf32>,
    return
  }
  func.func @transform_0(%arg0: i32) -> (i32, i32) {
    %c0_i32 = arith.constant 0 : i32
    %c0_i32_0 = arith.constant 0 : i32
    return %arg0, %c0_i32 : i32, i32
  }
  func.func @transform_1(%arg0: i32) -> (i32, i32) {
    %c0_i32 = arith.constant 0 : i32
    %c0_i32_0 = arith.constant 0 : i32
    %c0_i32_1 = arith.constant 0 : i32
    return %c0_i32, %c0_i32_0 : i32, i32
  }
  func.func @transform_2(%arg0: i32) -> (i32, i32) {
    %c0_i32 = arith.constant 0 : i32
    %c0_i32_0 = arith.constant 0 : i32
    %c0_i32_1 = arith.constant 0 : i32
    return %c0_i32, %c0_i32_0 : i32, i32
  }
  func.func @transform_3(%arg0: i32) -> (i32, i32) {
    %c0_i32 = arith.constant 0 : i32
    %c0_i32_0 = arith.constant 0 : i32
    %c0_i32_1 = arith.constant 0 : i32
    return %c0_i32, %c0_i32_0 : i32, i32
  }
  func.func @transform_4(%arg0: i32) -> (i32, i32) {
    %c0_i32 = arith.constant 0 : i32
    %c0_i32_0 = arith.constant 0 : i32
    %c0_i32_1 = arith.constant 0 : i32
    return %c0_i32, %c0_i32_0 : i32, i32
  }
  func.func @transform_5(%arg0: i32) -> (i32, i32) {
    %c0_i32 = arith.constant 0 : i32
    %c0_i32_0 = arith.constant 0 : i32
    %c0_i32_1 = arith.constant 0 : i32
    return %c0_i32, %c0_i32_0 : i32, i32
  }
  func.func @transform_6(%arg0: i32) -> (i32, i32) {
    %c0_i32 = arith.constant 0 : i32
    %c0_i32_0 = arith.constant 0 : i32
    %c0_i32_1 = arith.constant 0 : i32
    return %c0_i32, %c0_i32_0 : i32, i32
  }
  func.func @transform_7(%arg0: i32) -> (i32, i32) {
    %c0_i32 = arith.constant 0 : i32
    %c0_i32_0 = arith.constant 0 : i32
    %c0_i32_1 = arith.constant 0 : i32
    return %c0_i32, %c0_i32_0 : i32, i32
  }
  func.func @transform_8(%arg0: i32) -> (i32, i32) {
    %c0_i32 = arith.constant 0 : i32
    %c0_i32_0 = arith.constant 0 : i32
    %c0_i32_1 = arith.constant 0 : i32
    return %c0_i32, %c0_i32_0 : i32, i32
  }
  func.func @transform_9(%arg0: i32) -> (i32, i32) {
    %c0_i32 = arith.constant 0 : i32
    %c0_i32_0 = arith.constant 0 : i32
    return %arg0, %c0_i32 : i32, i32
  }
  func.func @transform_10(%arg0: i32) -> (i32, i32) {
    %c0_i32 = arith.constant 0 : i32
    %c0_i32_0 = arith.constant 0 : i32
    return %arg0, %c0_i32 : i32, i32
  }
}

</mosaic_0001>

<llo_original>
// kernel: _lambda_.1
$region0: #{_lambda_.1}
  #allocation0 [shape = 'u32[]', space=smem, size = 0x4, offset = 0x4, fixed_abs, tag = 'smem constant byte address 0x4 - core index']
  #allocation1 [shape = 'u32[144,128]{1,0:T(1,128)}', space=vmem, size = 0x12000, scoped, tag = 'internal scratch']
  %s0 = inlined_call_operand.hbm [shape: f32[256,128], index: 0, kind: input, shape index: {}]
  %s1 = inlined_call_operand.hbm [shape: bf16[128,128], index: 1, kind: input, shape index: {}]
  %s2 = inlined_call_operand.vmem [shape: f32[1,128], index: 2, kind: input, shape index: {}]
  %s3 = inlined_call_operand.hbm [shape: bf16[128,128], index: 3, kind: input, shape index: {}]
  %s4 = inlined_call_operand.vmem [shape: f32[1,128], index: 4, kind: input, shape index: {}]
  %s5 = inlined_call_operand.hbm [shape: bf16[128,128], index: 5, kind: input, shape index: {}]
  %s6 = inlined_call_operand.vmem [shape: f32[1,128], index: 6, kind: input, shape index: {}]
  %s7 = inlined_call_operand.hbm [shape: bf16[128,128], index: 7, kind: input, shape index: {}]
  %s8 = inlined_call_operand.vmem [shape: f32[1,128], index: 8, kind: input, shape index: {}]
  %s9 = inlined_call_operand.hbm [shape: f32[256,128], index: 9, kind: output, shape index: {0}]
  %s10 = inlined_call_operand.vmem [shape: f32[256,128], index: 10, kind: output, shape index: {1}]
  %11 = xla_tuple %s9, %s10
  %s12 = sld [smem:[#allocation0]]
  $region97: #{_lambda_.1} parent=0
    _
  %s14 = ssub.s32 1, %s12
  %s15 = scalar_select 0, %s14, %s12
  $region1: #{_lambda_.1} parent=0
    #allocation2 [shape = 'u8[131072]{0}', space=vmem, size = 0x20000, scoped, tag = 'input window, operand 0']
    #allocation3 [shape = 's32[2]{0}', space=sflag, size = 0x8, scoped, tag = 'scoped memory for _lambda_.1']
    #allocation4 [shape = 's32[2]{0}', space=sflag, size = 0x8, scoped, tag = 'scoped memory for _lambda_.1']
    #allocation5 [shape = 'u8[32768]{0}', space=vmem, size = 0x8000, scoped, tag = 'input window, operand 1, single buffered']
    #allocation6 [shape = 's32[1]{0}', space=sflag, size = 0x4, scoped, tag = 'scoped memory for _lambda_.1']
    #allocation7 [shape = 'u8[32768]{0}', space=vmem, size = 0x8000, scoped, tag = 'input window, operand 3, single buffered']
    #allocation8 [shape = 'u8[32768]{0}', space=vmem, size = 0x8000, scoped, tag = 'input window, operand 5, single buffered']
    #allocation9 [shape = 's32[1]{0}', space=sflag, size = 0x4, scoped, tag = 'scoped memory for _lambda_.1']
    #allocation10 [shape = 'u8[32768]{0}', space=vmem, size = 0x8000, scoped, tag = 'input window, operand 7, single buffered']
    #allocation11 [shape = 'u8[131072]{0}', space=vmem, size = 0x20000, scoped, tag = 'output window, operand 0']
    %16 = vsyncpa [#allocation3], 0
    %s17 = scalar_lea.sflag [#allocation3], 1
    %18 = vsyncpa %s17, 0
    %19 = vsyncpa [#allocation6], 0
    %20 = vsyncpa [#allocation9], 0
    %21 = vsyncpa [#allocation4], 0
    %s22 = scalar_lea.sflag [#allocation4], 1
    %23 = vsyncpa %s22, 0
    loop: start=0, step=1, limit=4
    $region2: #{_lambda_.1} parent=1 // loop_pre_header
      _
    $region3: #{_lambda_.1} parent=1 // loop_header
      %s25 = sphi 0, %s29
      %p26 = scmp.ge.s32.totalorder %s25, 4
      %s35 = sphi 0, %s37
      %s38 = sphi 0, %s35
      %s39 = sphi 0, %s38
      %s55 = sphi 0, %s39
      %s59 = sphi 0, %s59
      %s61 = sphi 0, %s59
      %s62 = sphi 0, %s61
      %s76 = sphi 0, %s62
      %s80 = sphi 0, %s80
      %s82 = sphi 0, %s80
      %s83 = sphi 0, %s82
      %s97 = sphi 0, %s83
      %s101 = sphi 0, %s101
      %s103 = sphi 0, %s101
      %s104 = sphi 0, %s103
      %s118 = sphi 0, %s104
      %s122 = sphi 0, %s122
      %s124 = sphi 0, %s122
      %s125 = sphi 0, %s124
      %s139 = sphi 0, %s125
      %s143 = sphi 0, %s143
      %s145 = sphi 0, %s143
      %s146 = sphi 0, %s145
      %s160 = sphi 0, %s146
      %s164 = sphi 0, %s164
      %s166 = sphi 0, %s164
      %s167 = sphi 0, %s166
      %s181 = sphi 0, %s167
      %s185 = sphi 0, %s185
      %s187 = sphi 0, %s185
      %s188 = sphi 0, %s187
      %s202 = sphi 0, %s188
      %s206 = sphi 0, %s206
      %s208 = sphi 0, %s206
      %s209 = sphi 0, %s208
      %s223 = sphi 0, %s209
      %s229 = sphi 0, %s231
      %s232 = sphi 0, %s229
      %s233 = sphi 0, %s232
      %s249 = sphi 0, %s233
      %s255 = sphi 0, %s257
      %s258 = sphi 0, %s255
      %s259 = sphi 0, %s258
      %s275 = sphi 0, %s259
    $region4: #{_lambda_.1} parent=1 // loop_header_branch
      %28 = sbr.rel (%p26) target = $region8
    $region5: #{_lambda_.1} parent=1 // loop_body
      %s30 = ssub.s32 %s25, 1
      %s31 = ssub.s32 %s25, 2
      %s32 = sadd.s32 %s25, 1
      %s33 = ssub.s32 %s25, %s32
      %p34 = scmp.eq.s32.totalorder %s33, 0
      %s36 = sadd.s32 %s35, 1
      %s37 = scalar_select %p34, %s35, %s36
      %p40 = pneg %p34
      %p41 = scmp.eq.s32.totalorder %s25, 1
      %p42 = por %p40, %p41
      %p43 = scmp.ne.s32.totalorder %s35, %s38
      %p44 = scmp.eq.s32.totalorder %s25, 0
      %p45 = por %p43, %p44
      %p46 = scmp.ne.s32.totalorder %s35, %s38
      %p47 = scmp.eq.s32.totalorder %s30, 1
      %p48 = por %p46, %p47
      %p49 = scmp.ne.s32.totalorder %s38, %s39
      %p50 = scmp.eq.s32.totalorder %s30, 0
      %p51 = por %p49, %p50
      %p52 = scmp.ne.s32.totalorder %s38, %s39
      %p53 = scmp.eq.s32.totalorder %s31, 1
      %p54 = por %p52, %p53
      %p56 = scmp.ne.s32.totalorder %s39, %s55
      %p57 = scmp.eq.s32.totalorder %s31, 0
      %p58 = por %p56, %p57
      %s60 = sadd.s32 %s59, 1
      %p63 = scmp.eq.s32.totalorder %s25, 1
      %p64 = scmp.ne.s32.totalorder %s59, %s61
      %p65 = scmp.eq.s32.totalorder %s25, 0
      %p66 = por %p64, %p65
      %p67 = scmp.ne.s32.totalorder %s59, %s61
      %p68 = scmp.eq.s32.totalorder %s30, 1
      %p69 = por %p67, %p68
      %p70 = scmp.ne.s32.totalorder %s61, %s62
      %p71 = scmp.eq.s32.totalorder %s30, 0
      %p72 = por %p70, %p71
      %p73 = scmp.ne.s32.totalorder %s61, %s62
      %p74 = scmp.eq.s32.totalorder %s31, 1
      %p75 = por %p73, %p74
      %p77 = scmp.ne.s32.totalorder %s62, %s76
      %p78 = scmp.eq.s32.totalorder %s31, 0
      %p79 = por %p77, %p78
      %s81 = sadd.s32 %s80, 1
      %p84 = scmp.eq.s32.totalorder %s25, 1
      %p85 = scmp.ne.s32.totalorder %s80, %s82
      %p86 = scmp.eq.s32.totalorder %s25, 0
      %p87 = por %p85, %p86
      %p88 = scmp.ne.s32.totalorder %s80, %s82
      %p89 = scmp.eq.s32.totalorder %s30, 1
      %p90 = por %p88, %p89
      %p91 = scmp.ne.s32.totalorder %s82, %s83
      %p92 = scmp.eq.s32.totalorder %s30, 0
      %p93 = por %p91, %p92
      %p94 = scmp.ne.s32.totalorder %s82, %s83
      %p95 = scmp.eq.s32.totalorder %s31, 1
      %p96 = por %p94, %p95
      %p98 = scmp.ne.s32.totalorder %s83, %s97
      %p99 = scmp.eq.s32.totalorder %s31, 0
      %p100 = por %p98, %p99
      %s102 = sadd.s32 %s101, 1
      %p105 = scmp.eq.s32.totalorder %s25, 1
      %p106 = scmp.ne.s32.totalorder %s101, %s103
      %p107 = scmp.eq.s32.totalorder %s25, 0
      %p108 = por %p106, %p107
      %p109 = scmp.ne.s32.totalorder %s101, %s103
      %p110 = scmp.eq.s32.totalorder %s30, 1
      %p111 = por %p109, %p110
      %p112 = scmp.ne.s32.totalorder %s103, %s104
      %p113 = scmp.eq.s32.totalorder %s30, 0
      %p114 = por %p112, %p113
      %p115 = scmp.ne.s32.totalorder %s103, %s104
      %p116 = scmp.eq.s32.totalorder %s31, 1
      %p117 = por %p115, %p116
      %p119 = scmp.ne.s32.totalorder %s104, %s118
      %p120 = scmp.eq.s32.totalorder %s31, 0
      %p121 = por %p119, %p120
      %s123 = sadd.s32 %s122, 1
      %p126 = scmp.eq.s32.totalorder %s25, 1
      %p127 = scmp.ne.s32.totalorder %s122, %s124
      %p128 = scmp.eq.s32.totalorder %s25, 0
      %p129 = por %p127, %p128
      %p130 = scmp.ne.s32.totalorder %s122, %s124
      %p131 = scmp.eq.s32.totalorder %s30, 1
      %p132 = por %p130, %p131
      %p133 = scmp.ne.s32.totalorder %s124, %s125
      %p134 = scmp.eq.s32.totalorder %s30, 0
      %p135 = por %p133, %p134
      %p136 = scmp.ne.s32.totalorder %s124, %s125
      %p137 = scmp.eq.s32.totalorder %s31, 1
      %p138 = por %p136, %p137
      %p140 = scmp.ne.s32.totalorder %s125, %s139
      %p141 = scmp.eq.s32.totalorder %s31, 0
      %p142 = por %p140, %p141
      %s144 = sadd.s32 %s143, 1
      %p147 = scmp.eq.s32.totalorder %s25, 1
      %p148 = scmp.ne.s32.totalorder %s143, %s145
      %p149 = scmp.eq.s32.totalorder %s25, 0
      %p150 = por %p148, %p149
      %p151 = scmp.ne.s32.totalorder %s143, %s145
      %p152 = scmp.eq.s32.totalorder %s30, 1
      %p153 = por %p151, %p152
      %p154 = scmp.ne.s32.totalorder %s145, %s146
      %p155 = scmp.eq.s32.totalorder %s30, 0
      %p156 = por %p154, %p155
      %p157 = scmp.ne.s32.totalorder %s145, %s146
      %p158 = scmp.eq.s32.totalorder %s31, 1
      %p159 = por %p157, %p158
      %p161 = scmp.ne.s32.totalorder %s146, %s160
      %p162 = scmp.eq.s32.totalorder %s31, 0
      %p163 = por %p161, %p162
      %s165 = sadd.s32 %s164, 1
      %p168 = scmp.eq.s32.totalorder %s25, 1
      %p169 = scmp.ne.s32.totalorder %s164, %s166
      %p170 = scmp.eq.s32.totalorder %s25, 0
      %p171 = por %p169, %p170
      %p172 = scmp.ne.s32.totalorder %s164, %s166
      %p173 = scmp.eq.s32.totalorder %s30, 1
      %p174 = por %p172, %p173
      %p175 = scmp.ne.s32.totalorder %s166, %s167
      %p176 = scmp.eq.s32.totalorder %s30, 0
      %p177 = por %p175, %p176
      %p178 = scmp.ne.s32.totalorder %s166, %s167
      %p179 = scmp.eq.s32.totalorder %s31, 1
      %p180 = por %p178, %p179
      %p182 = scmp.ne.s32.totalorder %s167, %s181
      %p183 = scmp.eq.s32.totalorder %s31, 0
      %p184 = por %p182, %p183
      %s186 = sadd.s32 %s185, 1
      %p189 = scmp.eq.s32.totalorder %s25, 1
      %p190 = scmp.ne.s32.totalorder %s185, %s187
      %p191 = scmp.eq.s32.totalorder %s25, 0
      %p192 = por %p190, %p191
      %p193 = scmp.ne.s32.totalorder %s185, %s187
      %p194 = scmp.eq.s32.totalorder %s30, 1
      %p195 = por %p193, %p194
      %p196 = scmp.ne.s32.totalorder %s187, %s188
      %p197 = scmp.eq.s32.totalorder %s30, 0
      %p198 = por %p196, %p197
      %p199 = scmp.ne.s32.totalorder %s187, %s188
      %p200 = scmp.eq.s32.totalorder %s31, 1
      %p201 = por %p199, %p200
      %p203 = scmp.ne.s32.totalorder %s188, %s202
      %p204 = scmp.eq.s32.totalorder %s31, 0
      %p205 = por %p203, %p204
      %s207 = sadd.s32 %s206, 1
      %p210 = scmp.eq.s32.totalorder %s25, 1
      %p211 = scmp.ne.s32.totalorder %s206, %s208
      %p212 = scmp.eq.s32.totalorder %s25, 0
      %p213 = por %p211, %p212
      %p214 = scmp.ne.s32.totalorder %s206, %s208
      %p215 = scmp.eq.s32.totalorder %s30, 1
      %p216 = por %p214, %p215
      %p217 = scmp.ne.s32.totalorder %s208, %s209
      %p218 = scmp.eq.s32.totalorder %s30, 0
      %p219 = por %p217, %p218
      %p220 = scmp.ne.s32.totalorder %s208, %s209
      %p221 = scmp.eq.s32.totalorder %s31, 1
      %p222 = por %p220, %p221
      %p224 = scmp.ne.s32.totalorder %s209, %s223
      %p225 = scmp.eq.s32.totalorder %s31, 0
      %p226 = por %p224, %p225
      %s227 = ssub.s32 %s25, %s32
      %p228 = scmp.eq.s32.totalorder %s227, 0
      %s230 = sadd.s32 %s229, 1
      %s231 = scalar_select %p228, %s229, %s230
      %p234 = pneg %p228
      %p235 = scmp.eq.s32.totalorder %s25, 1
      %p236 = por %p234, %p235
      %p237 = scmp.ne.s32.totalorder %s229, %s232
      %p238 = scmp.eq.s32.totalorder %s25, 0
      %p239 = por %p237, %p238
      %p240 = scmp.ne.s32.totalorder %s229, %s232
      %p241 = scmp.eq.s32.totalorder %s30, 1
      %p242 = por %p240, %p241
      %p243 = scmp.ne.s32.totalorder %s232, %s233
      %p244 = scmp.eq.s32.totalorder %s30, 0
      %p245 = por %p243, %p244
      %p246 = scmp.ne.s32.totalorder %s232, %s233
      %p247 = scmp.eq.s32.totalorder %s31, 1
      %p248 = por %p246, %p247
      %p250 = scmp.ne.s32.totalorder %s233, %s249
      %p251 = scmp.eq.s32.totalorder %s31, 0
      %p252 = por %p250, %p251
      %s253 = ssub.s32 %s25, %s32
      %p254 = scmp.eq.s32.totalorder %s253, 0
      %s256 = sadd.s32 %s255, 1
      %s257 = scalar_select %p254, %s255, %s256
      %p260 = pneg %p254
      %p261 = scmp.eq.s32.totalorder %s25, 1
      %p262 = por %p260, %p261
      %p263 = scmp.ne.s32.totalorder %s255, %s258
      %p264 = scmp.eq.s32.totalorder %s25, 0
      %p265 = por %p263, %p264
      %p266 = scmp.ne.s32.totalorder %s255, %s258
      %p267 = scmp.eq.s32.totalorder %s30, 1
      %p268 = por %p266, %p267
      %p269 = scmp.ne.s32.totalorder %s258, %s259
      %p270 = scmp.eq.s32.totalorder %s30, 0
      %p271 = por %p269, %p270
      %p272 = scmp.ne.s32.totalorder %s258, %s259
      %p273 = scmp.eq.s32.totalorder %s31, 1
      %p274 = por %p272, %p273
      %p276 = scmp.ne.s32.totalorder %s259, %s275
      %p277 = scmp.eq.s32.totalorder %s31, 0
      %p278 = por %p276, %p277
      %p279 = scmp.le.s32.totalorder 1, %s25
      %p280 = scmp.lt.s32.totalorder %s25, 3
      %p281 = pnand %p279, %p280
      %p282 = pneg %p281
      // Predicated region
      $region9: #{_lambda_.1} parent=5 // pred_check
        _
      $region10: #{_lambda_.1} parent=5 // pred_check_branch
        %284 = sbr.rel (%p281) target = $region12
      $region11: #{_lambda_.1} parent=5 // pred_region
        %s285 = ssub.s32 %s25, 1
        // Predicated region
        $region13: #{_lambda_.1} parent=11 // pred_check
          %p286 = pneg %p72
        $region14: #{_lambda_.1} parent=11 // pred_check_branch
          %288 = sbr.rel (%p286) target = $region16
        $region15: #{_lambda_.1} parent=11 // pred_region
          %s290 = ssub.s32 1024, 1024
          %291 = vsyncadd [#allocation6], %s290
          %s292 = sshll.u32 [#allocation5], 4
          %s293 = int_to_ptr.vmem [resolvable:$true] %s292
          %298 = dma.hbm_to_vmem [thread:$0]  %s1, 1024, %s293, [#allocation6], 64, 64, 4
        $region16: #{_lambda_.1} parent=11 // pred_fallthru
          _
        // Predicated region
        $region17: #{_lambda_.1} parent=11 // pred_check
          %p299 = pneg %p93
        $region18: #{_lambda_.1} parent=11 // pred_check_branch
          %301 = sbr.rel (%p299) target = $region20
        $region19: #{_lambda_.1} parent=11 // pred_region
          _
        $region20: #{_lambda_.1} parent=11 // pred_fallthru
          _
        // Predicated region
        $region21: #{_lambda_.1} parent=11 // pred_check
          %p302 = pneg %p114
        $region22: #{_lambda_.1} parent=11 // pred_check_branch
          %304 = sbr.rel (%p302) target = $region24
        $region23: #{_lambda_.1} parent=11 // pred_region
          %s306 = ssub.s32 1024, 1024
          %307 = vsyncadd [#allocation6], %s306
          %s308 = sshll.u32 [#allocation7], 4
          %s309 = int_to_ptr.vmem [resolvable:$true] %s308
          %314 = dma.hbm_to_vmem [thread:$0]  %s3, 1024, %s309, [#allocation6], 64, 64, 4
        $region24: #{_lambda_.1} parent=11 // pred_fallthru
          _
        // Predicated region
        $region25: #{_lambda_.1} parent=11 // pred_check
          %p315 = pneg %p135
        $region26: #{_lambda_.1} parent=11 // pred_check_branch
          %317 = sbr.rel (%p315) target = $region28
        $region27: #{_lambda_.1} parent=11 // pred_region
          _
        $region28: #{_lambda_.1} parent=11 // pred_fallthru
          _
        // Predicated region
        $region29: #{_lambda_.1} parent=11 // pred_check
          %p318 = pneg %p156
        $region30: #{_lambda_.1} parent=11 // pred_check_branch
          %320 = sbr.rel (%p318) target = $region32
        $region31: #{_lambda_.1} parent=11 // pred_region
          %s322 = ssub.s32 1024, 1024
          %323 = vsyncadd [#allocation9], %s322
          %s324 = sshll.u32 [#allocation8], 4
          %s325 = int_to_ptr.vmem [resolvable:$true] %s324
          %330 = dma.hbm_to_vmem [thread:$0]  %s5, 1024, %s325, [#allocation9], 64, 64, 4
        $region32: #{_lambda_.1} parent=11 // pred_fallthru
          _
        // Predicated region
        $region33: #{_lambda_.1} parent=11 // pred_check
          %p331 = pneg %p177
        $region34: #{_lambda_.1} parent=11 // pred_check_branch
          %333 = sbr.rel (%p331) target = $region36
        $region35: #{_lambda_.1} parent=11 // pred_region
          _
        $region36: #{_lambda_.1} parent=11 // pred_fallthru
          _
        // Predicated region
        $region37: #{_lambda_.1} parent=11 // pred_check
          %p334 = pneg %p198
        $region38: #{_lambda_.1} parent=11 // pred_check_branch
          %336 = sbr.rel (%p334) target = $region40
        $region39: #{_lambda_.1} parent=11 // pred_region
          %s338 = ssub.s32 1024, 1024
          %339 = vsyncadd [#allocation9], %s338
          %s340 = sshll.u32 [#allocation10], 4
          %s341 = int_to_ptr.vmem [resolvable:$true] %s340
          %346 = dma.hbm_to_vmem [thread:$0]  %s7, 1024, %s341, [#allocation9], 64, 64, 4
        $region40: #{_lambda_.1} parent=11 // pred_fallthru
          _
        // Predicated region
        $region41: #{_lambda_.1} parent=11 // pred_check
          %p347 = pneg %p219
        $region42: #{_lambda_.1} parent=11 // pred_check_branch
          %349 = sbr.rel (%p347) target = $region44
        $region43: #{_lambda_.1} parent=11 // pred_region
          _
        $region44: #{_lambda_.1} parent=11 // pred_fallthru
          _
      $region12: #{_lambda_.1} parent=5 // pred_fallthru
        _
      %p350 = scmp.lt.s32.totalorder %s25, 2
      // Predicated region
      $region45: #{_lambda_.1} parent=5 // pred_check
        %p351 = pneg %p350
      $region46: #{_lambda_.1} parent=5 // pred_check_branch
        %353 = sbr.rel (%p351) target = $region48
      $region47: #{_lambda_.1} parent=5 // pred_region
        // Predicated region
        $region49: #{_lambda_.1} parent=47 // pred_check
          %p354 = pneg %p45
        $region50: #{_lambda_.1} parent=47 // pred_check_branch
          %356 = sbr.rel (%p354) target = $region52
        $region51: #{_lambda_.1} parent=47 // pred_region
          %s357 = sand.u32 %s35, 1
          %s358 = scalar_lea.sflag [#allocation3], %s357
          %s359 = sand.u32 %s35, 1
          %s360 = smul.addr %s359, 128
          %s361 = scalar_lea.vmem [#allocation2], %s360
          %s362 = smul.u32 16, %s25
          %s364 = ssub.s32 2048, 2048
          %365 = vsyncadd %s358, %s364
          %s366 = smul.addr %s362, 128
          %s367 = scalar_lea.hbm %s0, %s366
          %s368 = sshll.u32 %s361, 4
          %s369 = int_to_ptr.vmem [resolvable:$true] %s368
          %374 = dma.hbm_to_vmem [thread:$0]  %s367, 2048, %s369, %s358, 128, 128, 8
        $region52: #{_lambda_.1} parent=47 // pred_fallthru
          _
      $region48: #{_lambda_.1} parent=5 // pred_fallthru
        _
      %p375 = scmp.le.s32.totalorder 1, %s25
      %p376 = scmp.lt.s32.totalorder %s25, 3
      %p377 = pnand %p375, %p376
      %p378 = pneg %p377
      // Predicated region
      $region53: #{_lambda_.1} parent=5 // pred_check
        _
      $region54: #{_lambda_.1} parent=5 // pred_check_branch
        %380 = sbr.rel (%p377) target = $region56
      $region55: #{_lambda_.1} parent=5 // pred_region
        %s381 = ssub.s32 %s25, 1
        %s382 = sand.u32 %s38, 1
        %s383 = scalar_lea.sflag [#allocation3], %s382
        %s384 = sand.u32 %s38, 1
        %s385 = smul.addr %s384, 128
        %s386 = scalar_lea.vmem [#allocation2], %s385
        // Predicated region
        $region57: #{_lambda_.1} parent=55 // pred_check
          %p387 = pneg %p51
        $region58: #{_lambda_.1} parent=55 // pred_check_branch
          %389 = sbr.rel (%p387) target = $region60
        $region59: #{_lambda_.1} parent=55 // pred_region
          %390 = dma.done %s383, 2048
        $region60: #{_lambda_.1} parent=55 // pred_fallthru
          _
        // Predicated region
        $region61: #{_lambda_.1} parent=55 // pred_check
          %p391 = pneg %p72
        $region62: #{_lambda_.1} parent=55 // pred_check_branch
          %393 = sbr.rel (%p391) target = $region64
        $region63: #{_lambda_.1} parent=55 // pred_region
          %394 = dma.done [#allocation6], 1024
        $region64: #{_lambda_.1} parent=55 // pred_fallthru
          _
        // Predicated region
        $region65: #{_lambda_.1} parent=55 // pred_check
          %p395 = pneg %p114
        $region66: #{_lambda_.1} parent=55 // pred_check_branch
          %397 = sbr.rel (%p395) target = $region68
        $region67: #{_lambda_.1} parent=55 // pred_region
          %398 = dma.done [#allocation6], 1024
        $region68: #{_lambda_.1} parent=55 // pred_fallthru
          _
        // Predicated region
        $region69: #{_lambda_.1} parent=55 // pred_check
          %p399 = pneg %p156
        $region70: #{_lambda_.1} parent=55 // pred_check_branch
          %401 = sbr.rel (%p399) target = $region72
        $region71: #{_lambda_.1} parent=55 // pred_region
          %402 = dma.done [#allocation9], 1024
        $region72: #{_lambda_.1} parent=55 // pred_fallthru
          _
        // Predicated region
        $region73: #{_lambda_.1} parent=55 // pred_check
          %p403 = pneg %p198
        $region74: #{_lambda_.1} parent=55 // pred_check_branch
          %405 = sbr.rel (%p403) target = $region76
        $region75: #{_lambda_.1} parent=55 // pred_region
          %406 = dma.done [#allocation9], 1024
        $region76: #{_lambda_.1} parent=55 // pred_fallthru
          _
        %s407 = sand.u32 %s38, 1
        %s408 = scalar_lea.sflag [#allocation3], %s407
        %s409 = sand.u32 %s38, 1
        %s410 = smul.addr %s409, 128
        %s411 = scalar_lea.vmem [#allocation2], %s410
        %p412 = pneg %p51
        %p413 = pneg %p48
        %p414 = pneg %p72
        %p415 = pneg %p69
        %p416 = pneg %p93
        %p417 = pneg %p90
        %p418 = pneg %p114
        %p419 = pneg %p111
        %p420 = pneg %p135
        %p421 = pneg %p132
        %p422 = pneg %p156
        %p423 = pneg %p153
        %p424 = pneg %p177
        %p425 = pneg %p174
        %p426 = pneg %p198
        %p427 = pneg %p195
        %p428 = pneg %p219
        %p429 = pneg %p216
        %p430 = pneg %p245
        %p431 = pneg %p242
        %s432 = sand.u32 %s232, 1
        %s433 = scalar_lea.sflag [#allocation4], %s432
        %s434 = sand.u32 %s232, 1
        %s435 = smul.addr %s434, 128
        %s436 = scalar_lea.vmem [#allocation11], %s435
        %p437 = pneg %p271
        %p438 = pneg %p268
        %s439 = smul.u32 16, %s30
        %p440 = scmp.lt.s32.totalorder %s439, 31
        %s441 = scalar_select %p440, %s439, 31
        %s442 = smul.addr %s441, 8
        %s443 = scalar_lea.vmem %s10, %s442
        %s444 = smul.u32 16, %s30
        %s445 = smul.u32 16, %s30
        %s446 = smul.u32 16, %s30
        %p447 = scmp.lt.s32.totalorder %s446, 31
        %s448 = scalar_select %p447, %s446, 31
        %s449 = smul.addr %s448, 8
        %s450 = scalar_lea.vmem %s10, %s449
        %s451 = smul.u32 16, %s30
        %v453 = vld [vmem:[%s386] sm:$0xff]
        %v454 = vld [vmem:[%s386 + $0x8] sm:$0xff]
        %v455 = vld [vmem:[%s386 + $0x10] sm:$0xff]
        %v456 = vld [vmem:[%s386 + $0x18] sm:$0xff]
        %v457 = vld [vmem:[%s386 + $0x20] sm:$0xff]
        %v458 = vld [vmem:[%s386 + $0x28] sm:$0xff]
        %v459 = vld [vmem:[%s386 + $0x30] sm:$0xff]
        %v460 = vld [vmem:[%s386 + $0x38] sm:$0xff]
        %v461 = vld [vmem:[%s386 + $0x40] sm:$0xff]
        %v462 = vld [vmem:[%s386 + $0x48] sm:$0xff]
        %v463 = vld [vmem:[%s386 + $0x50] sm:$0xff]
        %v464 = vld [vmem:[%s386 + $0x58] sm:$0xff]
        %v465 = vld [vmem:[%s386 + $0x60] sm:$0xff]
        %v466 = vld [vmem:[%s386 + $0x68] sm:$0xff]
        %v467 = vld [vmem:[%s386 + $0x70] sm:$0xff]
        %v468 = vld [vmem:[%s386 + $0x78] sm:$0xff]
        %v469 = vpack.c.bf16 %v454, %v453
        %v470 = vpack.c.bf16 %v456, %v455
        %v471 = vpack.c.bf16 %v458, %v457
        %v472 = vpack.c.bf16 %v460, %v459
        %v473 = vpack.c.bf16 %v462, %v461
        %v474 = vpack.c.bf16 %v464, %v463
        %v475 = vpack.c.bf16 %v466, %v465
        %v476 = vpack.c.bf16 %v468, %v467
        %v477 = vld [vmem:[#allocation5] sm:$0xf]
        %v478 = vld [vmem:[#allocation5 + $0x4] sm:$0xf]
        %v479 = vld [vmem:[#allocation5 + $0x8] sm:$0xf]
        %v480 = vld [vmem:[#allocation5 + $0xc] sm:$0xf]
        %v481 = vld [vmem:[#allocation5 + $0x10] sm:$0xf]
        %v482 = vld [vmem:[#allocation5 + $0x14] sm:$0xf]
        %v483 = vld [vmem:[#allocation5 + $0x18] sm:$0xf]
        %v484 = vld [vmem:[#allocation5 + $0x1c] sm:$0xf]
        %v485 = vld [vmem:[#allocation5 + $0x20] sm:$0xf]
        %v486 = vld [vmem:[#allocation5 + $0x24] sm:$0xf]
        %v487 = vld [vmem:[#allocation5 + $0x28] sm:$0xf]
        %v488 = vld [vmem:[#allocation5 + $0x2c] sm:$0xf]
        %v489 = vld [vmem:[#allocation5 + $0x30] sm:$0xf]
        %v490 = vld [vmem:[#allocation5 + $0x34] sm:$0xf]
        %v491 = vld [vmem:[#allocation5 + $0x38] sm:$0xf]
        %v492 = vld [vmem:[#allocation5 + $0x3c] sm:$0xf]
        %v493 = vld [vmem:[%s2] sm:$0x1]
        %v495 = vlaneseq
        %v496 = vshrl.u32 %v495, 7
        %v497 = vsub.s32 0, %v496
        %v498 = vrot.slane %v493, %v497
        %v516 = vunpack.c.l.b16 %v477
        %v517 = vunpack.c.l.b16 %v478
        %v518 = vunpack.c.l.b16 %v479
        %v519 = vunpack.c.l.b16 %v480
        %v520 = vunpack.c.l.b16 %v481
        %v521 = vunpack.c.l.b16 %v482
        %v522 = vunpack.c.l.b16 %v483
        %v523 = vunpack.c.l.b16 %v484
        %v524 = vunpack.c.l.b16 %v485
        %v525 = vunpack.c.l.b16 %v486
        %v526 = vunpack.c.l.b16 %v487
        %v527 = vunpack.c.l.b16 %v488
        %v528 = vunpack.c.l.b16 %v489
        %v529 = vunpack.c.l.b16 %v490
        %v530 = vunpack.c.l.b16 %v491
        %v531 = vunpack.c.l.b16 %v492
        %v532 = vpack.c.b16 %v517, %v516
        %v533 = vpack.c.b16 %v519, %v518
        %v534 = vpack.c.b16 %v521, %v520
        %v535 = vpack.c.b16 %v523, %v522
        %v536 = vpack.c.b16 %v525, %v524
        %v537 = vpack.c.b16 %v527, %v526
        %v538 = vpack.c.b16 %v529, %v528
        %v539 = vpack.c.b16 %v531, %v530
        %548 = vmatprep.subr.bf16.mxu0 0
        %549 = vmatpush1.bf16.msra.mxu0 %v532
        %550 = vmatprep.subr.bf16.mxu0 0
        %551 = vmatpush1.bf16.msra.mxu0 %v533
        %552 = vmatprep.subr.bf16.mxu0 0
        %553 = vmatpush1.bf16.msra.mxu0 %v534
        %554 = vmatprep.subr.bf16.mxu0 0
        %555 = vmatpush1.bf16.msra.mxu0 %v535
        %556 = vmatprep.subr.bf16.mxu0 0
        %557 = vmatpush1.bf16.msra.mxu0 %v536
        %558 = vmatprep.subr.bf16.mxu0 0
        %559 = vmatpush1.bf16.msra.mxu0 %v537
        %560 = vmatprep.subr.bf16.mxu0 0
        %561 = vmatpush1.bf16.msra.mxu0 %v538
        %562 = vmatprep.subr.bf16.mxu0 0
        %563 = vmatpush1.bf16.msra.mxu0 %v539
        %564 = vmatprep.subr.bf16.mxu0 0
        %565 = vmatpush1.bf16.msra.mxu0 0
        %566 = vmatprep.subr.bf16.mxu0 0
        %567 = vmatpush1.bf16.msra.mxu0 0
        %568 = vmatprep.subr.bf16.mxu0 0
        %569 = vmatpush1.bf16.msra.mxu0 0
        %570 = vmatprep.subr.bf16.mxu0 0
        %571 = vmatpush1.bf16.msra.mxu0 0
        %572 = vmatprep.subr.bf16.mxu0 0
        %573 = vmatpush1.bf16.msra.mxu0 0
        %574 = vmatprep.subr.bf16.mxu0 0
        %575 = vmatpush1.bf16.msra.mxu0 0
        %576 = vmatprep.subr.bf16.mxu0 0
        %577 = vmatpush1.bf16.msra.mxu0 0
        %578 = vmatprep.subr.bf16.mxu0 0
        %579 = vmatpush1.bf16.msra.mxu0 0
        %580 = vmatprep.mubr.bf16.mxu0 0
        %581 = vmatmul.mubr.bf16.gmra.mrb[0].mxu0 %v469
        %v582 = vpop.f32.mrb[0].mxu0
        %v583 = vadd.f32 %v498, %v582
        %v584 = vpop.f32.mrb[0].mxu0
        %v585 = vpop.f32.mrb[0].mxu0
        %v586 = vadd.f32 %v498, %v585
        %v587 = vpop.f32.mrb[0].mxu0
        %588 = vmatprep.mubr.bf16.mxu0 0
        %589 = vmatmul.mubr.bf16.gmra.mrb[0].mxu0 %v470
        %v590 = vpop.f32.mrb[0].mxu0
        %v591 = vadd.f32 %v498, %v590
        %v592 = vpop.f32.mrb[0].mxu0
        %v593 = vpop.f32.mrb[0].mxu0
        %v594 = vadd.f32 %v498, %v593
        %v595 = vpop.f32.mrb[0].mxu0
        %596 = vmatprep.mubr.bf16.mxu0 0
        %597 = vmatmul.mubr.bf16.gmra.mrb[0].mxu0 %v471
        %v598 = vpop.f32.mrb[0].mxu0
        %v599 = vadd.f32 %v498, %v598
        %v600 = vpop.f32.mrb[0].mxu0
        %v601 = vpop.f32.mrb[0].mxu0
        %v602 = vadd.f32 %v498, %v601
        %v603 = vpop.f32.mrb[0].mxu0
        %604 = vmatprep.mubr.bf16.mxu0 0
        %605 = vmatmul.mubr.bf16.gmra.mrb[0].mxu0 %v472
        %v606 = vpop.f32.mrb[0].mxu0
        %v607 = vadd.f32 %v498, %v606
        %v608 = vpop.f32.mrb[0].mxu0
        %v609 = vpop.f32.mrb[0].mxu0
        %v610 = vadd.f32 %v498, %v609
        %v611 = vpop.f32.mrb[0].mxu0
        %612 = vmatprep.mubr.bf16.mxu0 0
        %613 = vmatmul.mubr.bf16.gmra.mrb[0].mxu0 %v473
        %v614 = vpop.f32.mrb[0].mxu0
        %v615 = vadd.f32 %v498, %v614
        %v616 = vpop.f32.mrb[0].mxu0
        %v617 = vpop.f32.mrb[0].mxu0
        %v618 = vadd.f32 %v498, %v617
        %v619 = vpop.f32.mrb[0].mxu0
        %620 = vmatprep.mubr.bf16.mxu0 0
        %621 = vmatmul.mubr.bf16.gmra.mrb[0].mxu0 %v474
        %v622 = vpop.f32.mrb[0].mxu0
        %v623 = vadd.f32 %v498, %v622
        %v624 = vpop.f32.mrb[0].mxu0
        %v625 = vpop.f32.mrb[0].mxu0
        %v626 = vadd.f32 %v498, %v625
        %v627 = vpop.f32.mrb[0].mxu0
        %628 = vmatprep.mubr.bf16.mxu0 0
        %629 = vmatmul.mubr.bf16.gmra.mrb[0].mxu0 %v475
        %v630 = vpop.f32.mrb[0].mxu0
        %v631 = vadd.f32 %v498, %v630
        %v632 = vpop.f32.mrb[0].mxu0
        %v633 = vpop.f32.mrb[0].mxu0
        %v634 = vadd.f32 %v498, %v633
        %v635 = vpop.f32.mrb[0].mxu0
        %636 = vmatprep.mubr.bf16.mxu0 0
        %637 = vmatmul.mubr.bf16.gmra.mrb[0].mxu0 %v476
        %v638 = vpop.f32.mrb[0].mxu0
        %v639 = vadd.f32 %v498, %v638
        %v640 = vpop.f32.mrb[0].mxu0
        %v641 = vpop.f32.mrb[0].mxu0
        %v642 = vadd.f32 %v498, %v641
        %v643 = vpop.f32.mrb[0].mxu0
        %644 = vdwg.mxu0
        %v645 = vmax.f32 %v583, 0.0
        %v646 = vmax.f32 %v586, 0.0
        %v647 = vmax.f32 %v591, 0.0
        %v648 = vmax.f32 %v594, 0.0
        %v649 = vmax.f32 %v599, 0.0
        %v650 = vmax.f32 %v602, 0.0
        %v651 = vmax.f32 %v607, 0.0
        %v652 = vmax.f32 %v610, 0.0
        %v653 = vmax.f32 %v615, 0.0
        %v654 = vmax.f32 %v618, 0.0
        %v655 = vmax.f32 %v623, 0.0
        %v656 = vmax.f32 %v626, 0.0
        %v657 = vmax.f32 %v631, 0.0
        %v658 = vmax.f32 %v634, 0.0
        %v659 = vmax.f32 %v639, 0.0
        %v660 = vmax.f32 %v642, 0.0
        %v661 = vpack.c.bf16 %v646, %v645
        %v662 = vpack.c.bf16 %v648, %v647
        %v663 = vpack.c.bf16 %v650, %v649
        %v664 = vpack.c.bf16 %v652, %v651
        %v665 = vpack.c.bf16 %v654, %v653
        %v666 = vpack.c.bf16 %v656, %v655
        %v667 = vpack.c.bf16 %v658, %v657
        %v668 = vpack.c.bf16 %v660, %v659
        %v669 = vld [vmem:[#allocation7] sm:$0xf]
        %v670 = vld [vmem:[#allocation7 + $0x4] sm:$0xf]
        %v671 = vld [vmem:[#allocation7 + $0x8] sm:$0xf]
        %v672 = vld [vmem:[#allocation7 + $0xc] sm:$0xf]
        %v673 = vld [vmem:[#allocation7 + $0x10] sm:$0xf]
        %v674 = vld [vmem:[#allocation7 + $0x14] sm:$0xf]
        %v675 = vld [vmem:[#allocation7 + $0x18] sm:$0xf]
        %v676 = vld [vmem:[#allocation7 + $0x1c] sm:$0xf]
        %v677 = vld [vmem:[#allocation7 + $0x20] sm:$0xf]
        %v678 = vld [vmem:[#allocation7 + $0x24] sm:$0xf]
        %v679 = vld [vmem:[#allocation7 + $0x28] sm:$0xf]
        %v680 = vld [vmem:[#allocation7 + $0x2c] sm:$0xf]
        %v681 = vld [vmem:[#allocation7 + $0x30] sm:$0xf]
        %v682 = vld [vmem:[#allocation7 + $0x34] sm:$0xf]
        %v683 = vld [vmem:[#allocation7 + $0x38] sm:$0xf]
        %v684 = vld [vmem:[#allocation7 + $0x3c] sm:$0xf]
        %v685 = vld [vmem:[%s4] sm:$0x1]
        %v687 = vlaneseq
        %v688 = vshrl.u32 %v687, 7
        %v689 = vsub.s32 0, %v688
        %v690 = vrot.slane %v685, %v689
        %v708 = vunpack.c.l.b16 %v669
        %v709 = vunpack.c.l.b16 %v670
        %v710 = vunpack.c.l.b16 %v671
        %v711 = vunpack.c.l.b16 %v672
        %v712 = vunpack.c.l.b16 %v673
        %v713 = vunpack.c.l.b16 %v674
        %v714 = vunpack.c.l.b16 %v675
        %v715 = vunpack.c.l.b16 %v676
        %v716 = vunpack.c.l.b16 %v677
        %v717 = vunpack.c.l.b16 %v678
        %v718 = vunpack.c.l.b16 %v679
        %v719 = vunpack.c.l.b16 %v680
        %v720 = vunpack.c.l.b16 %v681
        %v721 = vunpack.c.l.b16 %v682
        %v722 = vunpack.c.l.b16 %v683
        %v723 = vunpack.c.l.b16 %v684
        %v724 = vpack.c.b16 %v709, %v708
        %v725 = vpack.c.b16 %v711, %v710
        %v726 = vpack.c.b16 %v713, %v712
        %v727 = vpack.c.b16 %v715, %v714
        %v728 = vpack.c.b16 %v717, %v716
        %v729 = vpack.c.b16 %v719, %v718
        %v730 = vpack.c.b16 %v721, %v720
        %v731 = vpack.c.b16 %v723, %v722
        %740 = vmatprep.subr.bf16.mxu0 0
        %741 = vmatpush1.bf16.msra.mxu0 %v724
        %742 = vmatprep.subr.bf16.mxu0 0
        %743 = vmatpush1.bf16.msra.mxu0 %v725
        %744 = vmatprep.subr.bf16.mxu0 0
        %745 = vmatpush1.bf16.msra.mxu0 %v726
        %746 = vmatprep.subr.bf16.mxu0 0
        %747 = vmatpush1.bf16.msra.mxu0 %v727
        %748 = vmatprep.subr.bf16.mxu0 0
        %749 = vmatpush1.bf16.msra.mxu0 %v728
        %750 = vmatprep.subr.bf16.mxu0 0
        %751 = vmatpush1.bf16.msra.mxu0 %v729
        %752 = vmatprep.subr.bf16.mxu0 0
        %753 = vmatpush1.bf16.msra.mxu0 %v730
        %754 = vmatprep.subr.bf16.mxu0 0
        %755 = vmatpush1.bf16.msra.mxu0 %v731
        %756 = vmatprep.subr.bf16.mxu0 0
        %757 = vmatpush1.bf16.msra.mxu0 0
        %758 = vmatprep.subr.bf16.mxu0 0
        %759 = vmatpush1.bf16.msra.mxu0 0
        %760 = vmatprep.subr.bf16.mxu0 0
        %761 = vmatpush1.bf16.msra.mxu0 0
        %762 = vmatprep.subr.bf16.mxu0 0
        %763 = vmatpush1.bf16.msra.mxu0 0
        %764 = vmatprep.subr.bf16.mxu0 0
        %765 = vmatpush1.bf16.msra.mxu0 0
        %766 = vmatprep.subr.bf16.mxu0 0
        %767 = vmatpush1.bf16.msra.mxu0 0
        %768 = vmatprep.subr.bf16.mxu0 0
        %769 = vmatpush1.bf16.msra.mxu0 0
        %770 = vmatprep.subr.bf16.mxu0 0
        %771 = vmatpush1.bf16.msra.mxu0 0
        %772 = vmatprep.mubr.bf16.mxu0 0
        %773 = vmatmul.mubr.bf16.gmra.mrb[0].mxu0 %v661
        %v774 = vpop.f32.mrb[0].mxu0
        %v775 = vadd.f32 %v690, %v774
        %v776 = vpop.f32.mrb[0].mxu0
        %v777 = vpop.f32.mrb[0].mxu0
        %v778 = vadd.f32 %v690, %v777
        %v779 = vpop.f32.mrb[0].mxu0
        %780 = vmatprep.mubr.bf16.mxu0 0
        %781 = vmatmul.mubr.bf16.gmra.mrb[0].mxu0 %v662
        %v782 = vpop.f32.mrb[0].mxu0
        %v783 = vadd.f32 %v690, %v782
        %v784 = vpop.f32.mrb[0].mxu0
        %v785 = vpop.f32.mrb[0].mxu0
        %v786 = vadd.f32 %v690, %v785
        %v787 = vpop.f32.mrb[0].mxu0
        %788 = vmatprep.mubr.bf16.mxu0 0
        %789 = vmatmul.mubr.bf16.gmra.mrb[0].mxu0 %v663
        %v790 = vpop.f32.mrb[0].mxu0
        %v791 = vadd.f32 %v690, %v790
        %v792 = vpop.f32.mrb[0].mxu0
        %v793 = vpop.f32.mrb[0].mxu0
        %v794 = vadd.f32 %v690, %v793
        %v795 = vpop.f32.mrb[0].mxu0
        %796 = vmatprep.mubr.bf16.mxu0 0
        %797 = vmatmul.mubr.bf16.gmra.mrb[0].mxu0 %v664
        %v798 = vpop.f32.mrb[0].mxu0
        %v799 = vadd.f32 %v690, %v798
        %v800 = vpop.f32.mrb[0].mxu0
        %v801 = vpop.f32.mrb[0].mxu0
        %v802 = vadd.f32 %v690, %v801
        %v803 = vpop.f32.mrb[0].mxu0
        %804 = vmatprep.mubr.bf16.mxu0 0
        %805 = vmatmul.mubr.bf16.gmra.mrb[0].mxu0 %v665
        %v806 = vpop.f32.mrb[0].mxu0
        %v807 = vadd.f32 %v690, %v806
        %v808 = vpop.f32.mrb[0].mxu0
        %v809 = vpop.f32.mrb[0].mxu0
        %v810 = vadd.f32 %v690, %v809
        %v811 = vpop.f32.mrb[0].mxu0
        %812 = vmatprep.mubr.bf16.mxu0 0
        %813 = vmatmul.mubr.bf16.gmra.mrb[0].mxu0 %v666
        %v814 = vpop.f32.mrb[0].mxu0
        %v815 = vadd.f32 %v690, %v814
        %v816 = vpop.f32.mrb[0].mxu0
        %v817 = vpop.f32.mrb[0].mxu0
        %v818 = vadd.f32 %v690, %v817
        %v819 = vpop.f32.mrb[0].mxu0
        %820 = vmatprep.mubr.bf16.mxu0 0
        %821 = vmatmul.mubr.bf16.gmra.mrb[0].mxu0 %v667
        %v822 = vpop.f32.mrb[0].mxu0
        %v823 = vadd.f32 %v690, %v822
        %v824 = vpop.f32.mrb[0].mxu0
        %v825 = vpop.f32.mrb[0].mxu0
        %v826 = vadd.f32 %v690, %v825
        %v827 = vpop.f32.mrb[0].mxu0
        %828 = vmatprep.mubr.bf16.mxu0 0
        %829 = vmatmul.mubr.bf16.gmra.mrb[0].mxu0 %v668
        %v830 = vpop.f32.mrb[0].mxu0
        %v831 = vadd.f32 %v690, %v830
        %v832 = vpop.f32.mrb[0].mxu0
        %v833 = vpop.f32.mrb[0].mxu0
        %v834 = vadd.f32 %v690, %v833
        %v835 = vpop.f32.mrb[0].mxu0
        %836 = vdwg.mxu0
        %v837 = vpack.c.bf16 %v778, %v775
        %v838 = vpack.c.bf16 %v786, %v783
        %v839 = vpack.c.bf16 %v794, %v791
        %v840 = vpack.c.bf16 %v802, %v799
        %v841 = vpack.c.bf16 %v810, %v807
        %v842 = vpack.c.bf16 %v818, %v815
        %v843 = vpack.c.bf16 %v826, %v823
        %v844 = vpack.c.bf16 %v834, %v831
        %v845 = vld [vmem:[#allocation8] sm:$0xf]
        %v846 = vld [vmem:[#allocation8 + $0x4] sm:$0xf]
        %v847 = vld [vmem:[#allocation8 + $0x8] sm:$0xf]
        %v848 = vld [vmem:[#allocation8 + $0xc] sm:$0xf]
        %v849 = vld [vmem:[#allocation8 + $0x10] sm:$0xf]
        %v850 = vld [vmem:[#allocation8 + $0x14] sm:$0xf]
        %v851 = vld [vmem:[#allocation8 + $0x18] sm:$0xf]
        %v852 = vld [vmem:[#allocation8 + $0x1c] sm:$0xf]
        %v853 = vld [vmem:[#allocation8 + $0x20] sm:$0xf]
        %v854 = vld [vmem:[#allocation8 + $0x24] sm:$0xf]
        %v855 = vld [vmem:[#allocation8 + $0x28] sm:$0xf]
        %v856 = vld [vmem:[#allocation8 + $0x2c] sm:$0xf]
        %v857 = vld [vmem:[#allocation8 + $0x30] sm:$0xf]
        %v858 = vld [vmem:[#allocation8 + $0x34] sm:$0xf]
        %v859 = vld [vmem:[#allocation8 + $0x38] sm:$0xf]
        %v860 = vld [vmem:[#allocation8 + $0x3c] sm:$0xf]
        %v861 = vld [vmem:[%s6] sm:$0x1]
        %v863 = vlaneseq
        %v864 = vshrl.u32 %v863, 7
        %v865 = vsub.s32 0, %v864
        %v866 = vrot.slane %v861, %v865
        %v884 = vunpack.c.l.b16 %v845
        %v885 = vunpack.c.l.b16 %v846
        %v886 = vunpack.c.l.b16 %v847
        %v887 = vunpack.c.l.b16 %v848
        %v888 = vunpack.c.l.b16 %v849
        %v889 = vunpack.c.l.b16 %v850
        %v890 = vunpack.c.l.b16 %v851
        %v891 = vunpack.c.l.b16 %v852
        %v892 = vunpack.c.l.b16 %v853
        %v893 = vunpack.c.l.b16 %v854
        %v894 = vunpack.c.l.b16 %v855
        %v895 = vunpack.c.l.b16 %v856
        %v896 = vunpack.c.l.b16 %v857
        %v897 = vunpack.c.l.b16 %v858
        %v898 = vunpack.c.l.b16 %v859
        %v899 = vunpack.c.l.b16 %v860
        %v900 = vpack.c.b16 %v885, %v884
        %v901 = vpack.c.b16 %v887, %v886
        %v902 = vpack.c.b16 %v889, %v888
        %v903 = vpack.c.b16 %v891, %v890
        %v904 = vpack.c.b16 %v893, %v892
        %v905 = vpack.c.b16 %v895, %v894
        %v906 = vpack.c.b16 %v897, %v896
        %v907 = vpack.c.b16 %v899, %v898
        %916 = vmatprep.subr.bf16.mxu0 0
        %917 = vmatpush1.bf16.msra.mxu0 %v900
        %918 = vmatprep.subr.bf16.mxu0 0
        %919 = vmatpush1.bf16.msra.mxu0 %v901
        %920 = vmatprep.subr.bf16.mxu0 0
        %921 = vmatpush1.bf16.msra.mxu0 %v902
        %922 = vmatprep.subr.bf16.mxu0 0
        %923 = vmatpush1.bf16.msra.mxu0 %v903
        %924 = vmatprep.subr.bf16.mxu0 0
        %925 = vmatpush1.bf16.msra.mxu0 %v904
        %926 = vmatprep.subr.bf16.mxu0 0
        %927 = vmatpush1.bf16.msra.mxu0 %v905
        %928 = vmatprep.subr.bf16.mxu0 0
        %929 = vmatpush1.bf16.msra.mxu0 %v906
        %930 = vmatprep.subr.bf16.mxu0 0
        %931 = vmatpush1.bf16.msra.mxu0 %v907
        %932 = vmatprep.subr.bf16.mxu0 0
        %933 = vmatpush1.bf16.msra.mxu0 0
        %934 = vmatprep.subr.bf16.mxu0 0
        %935 = vmatpush1.bf16.msra.mxu0 0
        %936 = vmatprep.subr.bf16.mxu0 0
        %937 = vmatpush1.bf16.msra.mxu0 0
        %938 = vmatprep.subr.bf16.mxu0 0
        %939 = vmatpush1.bf16.msra.mxu0 0
        %940 = vmatprep.subr.bf16.mxu0 0
        %941 = vmatpush1.bf16.msra.mxu0 0
        %942 = vmatprep.subr.bf16.mxu0 0
        %943 = vmatpush1.bf16.msra.mxu0 0
        %944 = vmatprep.subr.bf16.mxu0 0
        %945 = vmatpush1.bf16.msra.mxu0 0
        %946 = vmatprep.subr.bf16.mxu0 0
        %947 = vmatpush1.bf16.msra.mxu0 0
        %948 = vmatprep.mubr.bf16.mxu0 0
        %949 = vmatmul.mubr.bf16.gmra.mrb[0].mxu0 %v837
        %v950 = vpop.f32.mrb[0].mxu0
        %v951 = vadd.f32 %v866, %v950
        %v952 = vpop.f32.mrb[0].mxu0
        %v953 = vpop.f32.mrb[0].mxu0
        %v954 = vadd.f32 %v866, %v953
        %v955 = vpop.f32.mrb[0].mxu0
        %956 = vmatprep.mubr.bf16.mxu0 0
        %957 = vmatmul.mubr.bf16.gmra.mrb[0].mxu0 %v838
        %v958 = vpop.f32.mrb[0].mxu0
        %v959 = vadd.f32 %v866, %v958
        %v960 = vpop.f32.mrb[0].mxu0
        %v961 = vpop.f32.mrb[0].mxu0
        %v962 = vadd.f32 %v866, %v961
        %v963 = vpop.f32.mrb[0].mxu0
        %964 = vmatprep.mubr.bf16.mxu0 0
        %965 = vmatmul.mubr.bf16.gmra.mrb[0].mxu0 %v839
        %v966 = vpop.f32.mrb[0].mxu0
        %v967 = vadd.f32 %v866, %v966
        %v968 = vpop.f32.mrb[0].mxu0
        %v969 = vpop.f32.mrb[0].mxu0
        %v970 = vadd.f32 %v866, %v969
        %v971 = vpop.f32.mrb[0].mxu0
        %972 = vmatprep.mubr.bf16.mxu0 0
        %973 = vmatmul.mubr.bf16.gmra.mrb[0].mxu0 %v840
        %v974 = vpop.f32.mrb[0].mxu0
        %v975 = vadd.f32 %v866, %v974
        %v976 = vpop.f32.mrb[0].mxu0
        %v977 = vpop.f32.mrb[0].mxu0
        %v978 = vadd.f32 %v866, %v977
        %v979 = vpop.f32.mrb[0].mxu0
        %980 = vmatprep.mubr.bf16.mxu0 0
        %981 = vmatmul.mubr.bf16.gmra.mrb[0].mxu0 %v841
        %v982 = vpop.f32.mrb[0].mxu0
        %v983 = vadd.f32 %v866, %v982
        %v984 = vpop.f32.mrb[0].mxu0
        %v985 = vpop.f32.mrb[0].mxu0
        %v986 = vadd.f32 %v866, %v985
        %v987 = vpop.f32.mrb[0].mxu0
        %988 = vmatprep.mubr.bf16.mxu0 0
        %989 = vmatmul.mubr.bf16.gmra.mrb[0].mxu0 %v842
        %v990 = vpop.f32.mrb[0].mxu0
        %v991 = vadd.f32 %v866, %v990
        %v992 = vpop.f32.mrb[0].mxu0
        %v993 = vpop.f32.mrb[0].mxu0
        %v994 = vadd.f32 %v866, %v993
        %v995 = vpop.f32.mrb[0].mxu0
        %996 = vmatprep.mubr.bf16.mxu0 0
        %997 = vmatmul.mubr.bf16.gmra.mrb[0].mxu0 %v843
        %v998 = vpop.f32.mrb[0].mxu0
        %v999 = vadd.f32 %v866, %v998
        %v1000 = vpop.f32.mrb[0].mxu0
        %v1001 = vpop.f32.mrb[0].mxu0
        %v1002 = vadd.f32 %v866, %v1001
        %v1003 = vpop.f32.mrb[0].mxu0
        %1004 = vmatprep.mubr.bf16.mxu0 0
        %1005 = vmatmul.mubr.bf16.gmra.mrb[0].mxu0 %v844
        %v1006 = vpop.f32.mrb[0].mxu0
        %v1007 = vadd.f32 %v866, %v1006
        %v1008 = vpop.f32.mrb[0].mxu0
        %v1009 = vpop.f32.mrb[0].mxu0
        %v1010 = vadd.f32 %v866, %v1009
        %v1011 = vpop.f32.mrb[0].mxu0
        %1012 = vdwg.mxu0
        %v1013 = vmax.f32 %v951, 0.0
        %v1014 = vmax.f32 %v954, 0.0
        %v1015 = vmax.f32 %v959, 0.0
        %v1016 = vmax.f32 %v962, 0.0
        %v1017 = vmax.f32 %v967, 0.0
        %v1018 = vmax.f32 %v970, 0.0
        %v1019 = vmax.f32 %v975, 0.0
        %v1020 = vmax.f32 %v978, 0.0
        %v1021 = vmax.f32 %v983, 0.0
        %v1022 = vmax.f32 %v986, 0.0
        %v1023 = vmax.f32 %v991, 0.0
        %v1024 = vmax.f32 %v994, 0.0
        %v1025 = vmax.f32 %v999, 0.0
        %v1026 = vmax.f32 %v1002, 0.0
        %v1027 = vmax.f32 %v1007, 0.0
        %v1028 = vmax.f32 %v1010, 0.0
        %v1029 = vpack.c.bf16 %v1014, %v1013
        %v1030 = vpack.c.bf16 %v1016, %v1015
        %v1031 = vpack.c.bf16 %v1018, %v1017
        %v1032 = vpack.c.bf16 %v1020, %v1019
        %v1033 = vpack.c.bf16 %v1022, %v1021
        %v1034 = vpack.c.bf16 %v1024, %v1023
        %v1035 = vpack.c.bf16 %v1026, %v1025
        %v1036 = vpack.c.bf16 %v1028, %v1027
        %v1037 = vld [vmem:[#allocation10] sm:$0xf]
        %v1038 = vld [vmem:[#allocation10 + $0x4] sm:$0xf]
        %v1039 = vld [vmem:[#allocation10 + $0x8] sm:$0xf]
        %v1040 = vld [vmem:[#allocation10 + $0xc] sm:$0xf]
        %v1041 = vld [vmem:[#allocation10 + $0x10] sm:$0xf]
        %v1042 = vld [vmem:[#allocation10 + $0x14] sm:$0xf]
        %v1043 = vld [vmem:[#allocation10 + $0x18] sm:$0xf]
        %v1044 = vld [vmem:[#allocation10 + $0x1c] sm:$0xf]
        %v1045 = vld [vmem:[#allocation10 + $0x20] sm:$0xf]
        %v1046 = vld [vmem:[#allocation10 + $0x24] sm:$0xf]
        %v1047 = vld [vmem:[#allocation10 + $0x28] sm:$0xf]
        %v1048 = vld [vmem:[#allocation10 + $0x2c] sm:$0xf]
        %v1049 = vld [vmem:[#allocation10 + $0x30] sm:$0xf]
        %v1050 = vld [vmem:[#allocation10 + $0x34] sm:$0xf]
        %v1051 = vld [vmem:[#allocation10 + $0x38] sm:$0xf]
        %v1052 = vld [vmem:[#allocation10 + $0x3c] sm:$0xf]
        %v1053 = vld [vmem:[%s8] sm:$0x1]
        %v1055 = vlaneseq
        %v1056 = vshrl.u32 %v1055, 7
        %v1057 = vsub.s32 0, %v1056
        %v1058 = vrot.slane %v1053, %v1057
        %v1076 = vunpack.c.l.b16 %v1037
        %v1077 = vunpack.c.l.b16 %v1038
        %v1078 = vunpack.c.l.b16 %v1039
        %v1079 = vunpack.c.l.b16 %v1040
        %v1080 = vunpack.c.l.b16 %v1041
        %v1081 = vunpack.c.l.b16 %v1042
        %v1082 = vunpack.c.l.b16 %v1043
        %v1083 = vunpack.c.l.b16 %v1044
        %v1084 = vunpack.c.l.b16 %v1045
        %v1085 = vunpack.c.l.b16 %v1046
        %v1086 = vunpack.c.l.b16 %v1047
        %v1087 = vunpack.c.l.b16 %v1048
        %v1088 = vunpack.c.l.b16 %v1049
        %v1089 = vunpack.c.l.b16 %v1050
        %v1090 = vunpack.c.l.b16 %v1051
        %v1091 = vunpack.c.l.b16 %v1052
        %v1092 = vpack.c.b16 %v1077, %v1076
        %v1093 = vpack.c.b16 %v1079, %v1078
        %v1094 = vpack.c.b16 %v1081, %v1080
        %v1095 = vpack.c.b16 %v1083, %v1082
        %v1096 = vpack.c.b16 %v1085, %v1084
        %v1097 = vpack.c.b16 %v1087, %v1086
        %v1098 = vpack.c.b16 %v1089, %v1088
        %v1099 = vpack.c.b16 %v1091, %v1090
        %1108 = vmatprep.subr.bf16.mxu0 0
        %1109 = vmatpush1.bf16.msra.mxu0 %v1092
        %1110 = vmatprep.subr.bf16.mxu0 0
        %1111 = vmatpush1.bf16.msra.mxu0 %v1093
        %1112 = vmatprep.subr.bf16.mxu0 0
        %1113 = vmatpush1.bf16.msra.mxu0 %v1094
        %1114 = vmatprep.subr.bf16.mxu0 0
        %1115 = vmatpush1.bf16.msra.mxu0 %v1095
        %1116 = vmatprep.subr.bf16.mxu0 0
        %1117 = vmatpush1.bf16.msra.mxu0 %v1096
        %1118 = vmatprep.subr.bf16.mxu0 0
        %1119 = vmatpush1.bf16.msra.mxu0 %v1097
        %1120 = vmatprep.subr.bf16.mxu0 0
        %1121 = vmatpush1.bf16.msra.mxu0 %v1098
        %1122 = vmatprep.subr.bf16.mxu0 0
        %1123 = vmatpush1.bf16.msra.mxu0 %v1099
        %1124 = vmatprep.subr.bf16.mxu0 0
        %1125 = vmatpush1.bf16.msra.mxu0 0
        %1126 = vmatprep.subr.bf16.mxu0 0
        %1127 = vmatpush1.bf16.msra.mxu0 0
        %1128 = vmatprep.subr.bf16.mxu0 0
        %1129 = vmatpush1.bf16.msra.mxu0 0
        %1130 = vmatprep.subr.bf16.mxu0 0
        %1131 = vmatpush1.bf16.msra.mxu0 0
        %1132 = vmatprep.subr.bf16.mxu0 0
        %1133 = vmatpush1.bf16.msra.mxu0 0
        %1134 = vmatprep.subr.bf16.mxu0 0
        %1135 = vmatpush1.bf16.msra.mxu0 0
        %1136 = vmatprep.subr.bf16.mxu0 0
        %1137 = vmatpush1.bf16.msra.mxu0 0
        %1138 = vmatprep.subr.bf16.mxu0 0
        %1139 = vmatpush1.bf16.msra.mxu0 0
        %1140 = vmatprep.mubr.bf16.mxu0 0
        %1141 = vmatmul.mubr.bf16.gmra.mrb[0].mxu0 %v1029
        %v1142 = vpop.f32.mrb[0].mxu0
        %v1143 = vadd.f32 %v1058, %v1142
        %v1144 = vpop.f32.mrb[0].mxu0
        %v1145 = vpop.f32.mrb[0].mxu0
        %v1146 = vadd.f32 %v1058, %v1145
        %v1147 = vpop.f32.mrb[0].mxu0
        %1148 = vmatprep.mubr.bf16.mxu0 0
        %1149 = vmatmul.mubr.bf16.gmra.mrb[0].mxu0 %v1030
        %v1150 = vpop.f32.mrb[0].mxu0
        %v1151 = vadd.f32 %v1058, %v1150
        %v1152 = vpop.f32.mrb[0].mxu0
        %v1153 = vpop.f32.mrb[0].mxu0
        %v1154 = vadd.f32 %v1058, %v1153
        %v1155 = vpop.f32.mrb[0].mxu0
        %1156 = vmatprep.mubr.bf16.mxu0 0
        %1157 = vmatmul.mubr.bf16.gmra.mrb[0].mxu0 %v1031
        %v1158 = vpop.f32.mrb[0].mxu0
        %v1159 = vadd.f32 %v1058, %v1158
        %v1160 = vpop.f32.mrb[0].mxu0
        %v1161 = vpop.f32.mrb[0].mxu0
        %v1162 = vadd.f32 %v1058, %v1161
        %v1163 = vpop.f32.mrb[0].mxu0
        %1164 = vmatprep.mubr.bf16.mxu0 0
        %1165 = vmatmul.mubr.bf16.gmra.mrb[0].mxu0 %v1032
        %v1166 = vpop.f32.mrb[0].mxu0
        %v1167 = vadd.f32 %v1058, %v1166
        %v1168 = vpop.f32.mrb[0].mxu0
        %v1169 = vpop.f32.mrb[0].mxu0
        %v1170 = vadd.f32 %v1058, %v1169
        %v1171 = vpop.f32.mrb[0].mxu0
        %1172 = vmatprep.mubr.bf16.mxu0 0
        %1173 = vmatmul.mubr.bf16.gmra.mrb[0].mxu0 %v1033
        %v1174 = vpop.f32.mrb[0].mxu0
        %v1175 = vadd.f32 %v1058, %v1174
        %v1176 = vpop.f32.mrb[0].mxu0
        %v1177 = vpop.f32.mrb[0].mxu0
        %v1178 = vadd.f32 %v1058, %v1177
        %v1179 = vpop.f32.mrb[0].mxu0
        %1180 = vmatprep.mubr.bf16.mxu0 0
        %1181 = vmatmul.mubr.bf16.gmra.mrb[0].mxu0 %v1034
        %v1182 = vpop.f32.mrb[0].mxu0
        %v1183 = vadd.f32 %v1058, %v1182
        %v1184 = vpop.f32.mrb[0].mxu0
        %v1185 = vpop.f32.mrb[0].mxu0
        %v1186 = vadd.f32 %v1058, %v1185
        %v1187 = vpop.f32.mrb[0].mxu0
        %1188 = vmatprep.mubr.bf16.mxu0 0
        %1189 = vmatmul.mubr.bf16.gmra.mrb[0].mxu0 %v1035
        %v1190 = vpop.f32.mrb[0].mxu0
        %v1191 = vadd.f32 %v1058, %v1190
        %v1192 = vpop.f32.mrb[0].mxu0
        %v1193 = vpop.f32.mrb[0].mxu0
        %v1194 = vadd.f32 %v1058, %v1193
        %v1195 = vpop.f32.mrb[0].mxu0
        %1196 = vmatprep.mubr.bf16.mxu0 0
        %1197 = vmatmul.mubr.bf16.gmra.mrb[0].mxu0 %v1036
        %v1198 = vpop.f32.mrb[0].mxu0
        %v1199 = vadd.f32 %v1058, %v1198
        %v1200 = vpop.f32.mrb[0].mxu0
        %v1201 = vpop.f32.mrb[0].mxu0
        %v1202 = vadd.f32 %v1058, %v1201
        %v1203 = vpop.f32.mrb[0].mxu0
        %1204 = vdwg.mxu0
        %1205 = vst [vmem:[%s450] sm:$0xff] %v775
        %1206 = vst [vmem:[%s450 + $0x8] sm:$0xff] %v778
        %1207 = vst [vmem:[%s450 + $0x10] sm:$0xff] %v783
        %1208 = vst [vmem:[%s450 + $0x18] sm:$0xff] %v786
        %1209 = vst [vmem:[%s450 + $0x20] sm:$0xff] %v791
        %1210 = vst [vmem:[%s450 + $0x28] sm:$0xff] %v794
        %1211 = vst [vmem:[%s450 + $0x30] sm:$0xff] %v799
        %1212 = vst [vmem:[%s450 + $0x38] sm:$0xff] %v802
        %1213 = vst [vmem:[%s450 + $0x40] sm:$0xff] %v807
        %1214 = vst [vmem:[%s450 + $0x48] sm:$0xff] %v810
        %1215 = vst [vmem:[%s450 + $0x50] sm:$0xff] %v815
        %1216 = vst [vmem:[%s450 + $0x58] sm:$0xff] %v818
        %1217 = vst [vmem:[%s450 + $0x60] sm:$0xff] %v823
        %1218 = vst [vmem:[%s450 + $0x68] sm:$0xff] %v826
        %1219 = vst [vmem:[%s450 + $0x70] sm:$0xff] %v831
        %1220 = vst [vmem:[%s450 + $0x78] sm:$0xff] %v834
        %1221 = vst [vmem:[%s436] sm:$0xff] %v1143
        %1222 = vst [vmem:[%s436 + $0x8] sm:$0xff] %v1146
        %1223 = vst [vmem:[%s436 + $0x10] sm:$0xff] %v1151
        %1224 = vst [vmem:[%s436 + $0x18] sm:$0xff] %v1154
        %1225 = vst [vmem:[%s436 + $0x20] sm:$0xff] %v1159
        %1226 = vst [vmem:[%s436 + $0x28] sm:$0xff] %v1162
        %1227 = vst [vmem:[%s436 + $0x30] sm:$0xff] %v1167
        %1228 = vst [vmem:[%s436 + $0x38] sm:$0xff] %v1170
        %1229 = vst [vmem:[%s436 + $0x40] sm:$0xff] %v1175
        %1230 = vst [vmem:[%s436 + $0x48] sm:$0xff] %v1178
        %1231 = vst [vmem:[%s436 + $0x50] sm:$0xff] %v1183
        %1232 = vst [vmem:[%s436 + $0x58] sm:$0xff] %v1186
        %1233 = vst [vmem:[%s436 + $0x60] sm:$0xff] %v1191
        %1234 = vst [vmem:[%s436 + $0x68] sm:$0xff] %v1194
        %1235 = vst [vmem:[%s436 + $0x70] sm:$0xff] %v1199
        %1236 = vst [vmem:[%s436 + $0x78] sm:$0xff] %v1202
        %s1237 = sand.u32 %s232, 1
        %s1238 = scalar_lea.sflag [#allocation4], %s1237
        %s1239 = sand.u32 %s232, 1
        %s1240 = smul.addr %s1239, 128
        %s1241 = scalar_lea.vmem [#allocation11], %s1240
        %s1242 = smul.u32 16, %s30
        %p1243 = scmp.lt.s32.totalorder %s1242, 31
        %s1244 = scalar_select %p1243, %s1242, 31
        %s1245 = smul.addr %s1244, 8
        %s1246 = scalar_lea.vmem %s10, %s1245
        // Predicated region
        $region77: #{_lambda_.1} parent=55 // pred_check
          %p1247 = pneg %p242
        $region78: #{_lambda_.1} parent=55 // pred_check_branch
          %1249 = sbr.rel (%p1247) target = $region80
        $region79: #{_lambda_.1} parent=55 // pred_region
          %s1250 = smul.u32 16, %s30
          %s1252 = ssub.s32 2048, 2048
          %1253 = vsyncadd %s1238, %s1252
          %s1254 = smul.addr %s1250, 128
          %s1255 = scalar_lea.hbm %s9, %s1254
          %s1256 = sshll.u32 %s1241, 4
          %s1257 = int_to_ptr.vmem [resolvable:$true] %s1256
          %1262 = dma.vmem_to_hbm [thread:$0]  %s1257, 2048, %s1255, %s1238, 128, 128, 8
        $region80: #{_lambda_.1} parent=55 // pred_fallthru
          _
        // Predicated region
        $region81: #{_lambda_.1} parent=55 // pred_check
          %p1263 = pneg %p268
        $region82: #{_lambda_.1} parent=55 // pred_check_branch
          %1265 = sbr.rel (%p1263) target = $region84
        $region83: #{_lambda_.1} parent=55 // pred_region
          %s1266 = smul.u32 16, %s30
        $region84: #{_lambda_.1} parent=55 // pred_fallthru
          _
      $region56: #{_lambda_.1} parent=5 // pred_fallthru
        _
      %p1267 = scmp.le.s32.totalorder 2, %s25
      // Predicated region
      $region85: #{_lambda_.1} parent=5 // pred_check
        %p1268 = pneg %p1267
      $region86: #{_lambda_.1} parent=5 // pred_check_branch
        %1270 = sbr.rel (%p1268) target = $region88
      $region87: #{_lambda_.1} parent=5 // pred_region
        %s1271 = ssub.s32 %s25, 2
        // Predicated region
        $region89: #{_lambda_.1} parent=87 // pred_check
          %p1272 = pneg %p248
        $region90: #{_lambda_.1} parent=87 // pred_check_branch
          %1274 = sbr.rel (%p1272) target = $region92
        $region91: #{_lambda_.1} parent=87 // pred_region
          %s1275 = sand.u32 %s233, 1
          %s1276 = scalar_lea.sflag [#allocation4], %s1275
          %s1277 = sand.u32 %s233, 1
          %s1278 = smul.addr %s1277, 128
          %s1279 = scalar_lea.vmem [#allocation11], %s1278
          %1280 = dma.done %s1276, 2048
        $region92: #{_lambda_.1} parent=87 // pred_fallthru
          _
        // Predicated region
        $region93: #{_lambda_.1} parent=87 // pred_check
          %p1281 = pneg %p274
        $region94: #{_lambda_.1} parent=87 // pred_check_branch
          %1283 = sbr.rel (%p1281) target = $region96
        $region95: #{_lambda_.1} parent=87 // pred_region
          %s1284 = smul.u32 16, %s31
          %p1285 = scmp.lt.s32.totalorder %s1284, 31
          %s1286 = scalar_select %p1285, %s1284, 31
          %s1287 = smul.addr %s1286, 8
          %s1288 = scalar_lea.vmem %s10, %s1287
        $region96: #{_lambda_.1} parent=87 // pred_fallthru
          _
      $region88: #{_lambda_.1} parent=5 // pred_fallthru
        _
    $region6: #{_lambda_.1} parent=1 // loop_footer
      %s29 = sadd.s32 1, %s25
    $region7: #{_lambda_.1} parent=1 // loop_footer_branch
      %24 = sbr.rel target = $region3
    $region8: #{_lambda_.1} parent=1 // loop_exit
      _
    %1289 = vsyncpa [#allocation3], 1
    %s1290 = scalar_lea.sflag [#allocation3], 1
    %1291 = vsyncpa %s1290, 1
    %1292 = vsyncpa [#allocation6], 1
    %1293 = vsyncpa [#allocation9], 1
    %1294 = vsyncpa [#allocation4], 1
    %s1295 = scalar_lea.sflag [#allocation4], 1
    %1296 = vsyncpa %s1295, 1

// kernel: _lambda_.1
$region0: #{_lambda_.1}
  #allocation0 [shape = 'u32[]', space=smem, size = 0x4, offset = 0x4, fixed_abs, tag = 'smem constant byte address 0x4 - core index']
  #allocation1 [shape = 'u32[144,128]{1,0:T(1,128)}', space=vmem, size = 0x12000, scoped, tag = 'internal scratch']
  %s0 = inlined_call_operand.hbm [shape: f32[256,128], index: 0, kind: input, shape index: {}]
  %s1 = inlined_call_operand.hbm [shape: bf16[128,128], index: 1, kind: input, shape index: {}]
  %s2 = inlined_call_operand.vmem [shape: f32[1,128], index: 2, kind: input, shape index: {}]
  %s3 = inlined_call_operand.hbm [shape: bf16[128,128], index: 3, kind: input, shape index: {}]
  %s4 = inlined_call_operand.vmem [shape: f32[1,128], index: 4, kind: input, shape index: {}]
  %s5 = inlined_call_operand.hbm [shape: bf16[128,128], index: 5, kind: input, shape index: {}]
  %s6 = inlined_call_operand.vmem [shape: f32[1,128], index: 6, kind: input, shape index: {}]
  %s7 = inlined_call_operand.hbm [shape: bf16[128,128], index: 7, kind: input, shape index: {}]
  %s8 = inlined_call_operand.vmem [shape: f32[1,128], index: 8, kind: input, shape index: {}]
  %s9 = inlined_call_operand.hbm [shape: f32[256,128], index: 9, kind: output, shape index: {0}]
  %s10 = inlined_call_operand.vmem [shape: f32[256,128], index: 10, kind: output, shape index: {1}]
  %11 = xla_tuple %s9, %s10
  %s12 = sld [smem:[#allocation0]]
  $region97: #{_lambda_.1} parent=0
    _
  %s14 = ssub.s32 1, %s12
  %s15 = scalar_select 0, %s14, %s12
  $region1: #{_lambda_.1} parent=0
    #allocation2 [shape = 'u8[131072]{0}', space=vmem, size = 0x20000, scoped, tag = 'input window, operand 0']
    #allocation3 [shape = 's32[2]{0}', space=sflag, size = 0x8, scoped, tag = 'scoped memory for _lambda_.1']
    #allocation4 [shape = 's32[2]{0}', space=sflag, size = 0x8, scoped, tag = 'scoped memory for _lambda_.1']
    #allocation5 [shape = 'u8[32768]{0}', space=vmem, size = 0x8000, scoped, tag = 'input window, operand 1, single buffered']
    #allocation6 [shape = 's32[1]{0}', space=sflag, size = 0x4, scoped, tag = 'scoped memory for _lambda_.1']
    #allocation7 [shape = 'u8[32768]{0}', space=vmem, size = 0x8000, scoped, tag = 'input window, operand 3, single buffered']
    #allocation8 [shape = 'u8[32768]{0}', space=vmem, size = 0x8000, scoped, tag = 'input window, operand 5, single buffered']
    #allocation9 [shape = 's32[1]{0}', space=sflag, size = 0x4, scoped, tag = 'scoped memory for _lambda_.1']
    #allocation10 [shape = 'u8[32768]{0}', space=vmem, size = 0x8000, scoped, tag = 'input window, operand 7, single buffered']
    #allocation11 [shape = 'u8[131072]{0}', space=vmem, size = 0x20000, scoped, tag = 'output window, operand 0']
    %16 = vsyncpa [#allocation3], 0
    %s17 = scalar_lea.sflag [#allocation3], 1
    %18 = vsyncpa %s17, 0
    %19 = vsyncpa [#allocation6], 0
    %20 = vsyncpa [#allocation9], 0
    %21 = vsyncpa [#allocation4], 0
    %s22 = scalar_lea.sflag [#allocation4], 1
    %23 = vsyncpa %s22, 0
    loop: start=0, step=1, limit=4
    $region2: #{_lambda_.1} parent=1 // loop_pre_header
      _
    $region3: #{_lambda_.1} parent=1 // loop_header
      %s25 = sphi 0, %s29
      %p26 = scmp.ge.s32.totalorder %s25, 4
      %s35 = sphi 0, %s37
      %s38 = sphi 0, %s35
      %s39 = sphi 0, %s38
      %s55 = sphi 0, %s39
      %s59 = sphi 0, %s59
      %s61 = sphi 0, %s59
      %s62 = sphi 0, %s61
      %s76 = sphi 0, %s62
      %s80 = sphi 0, %s80
      %s82 = sphi 0, %s80
      %s83 = sphi 0, %s82
      %s97 = sphi 0, %s83
      %s101 = sphi 0, %s101
      %s103 = sphi 0, %s101
      %s104 = sphi 0, %s103
      %s118 = sphi 0, %s104
      %s122 = sphi 0, %s122
      %s124 = sphi 0, %s122
      %s125 = sphi 0, %s124
      %s139 = sphi 0, %s125
      %s143 = sphi 0, %s143
      %s145 = sphi 0, %s143
      %s146 = sphi 0, %s145
      %s160 = sphi 0, %s146
      %s164 = sphi 0, %s164
      %s166 = sphi 0, %s164
      %s167 = sphi 0, %s166
      %s181 = sphi 0, %s167
      %s185 = sphi 0, %s185
      %s187 = sphi 0, %s185
      %s188 = sphi 0, %s187
      %s202 = sphi 0, %s188
      %s206 = sphi 0, %s206
      %s208 = sphi 0, %s206
      %s209 = sphi 0, %s208
      %s223 = sphi 0, %s209
      %s229 = sphi 0, %s231
      %s232 = sphi 0, %s229
      %s233 = sphi 0, %s232
      %s249 = sphi 0, %s233
      %s255 = sphi 0, %s257
      %s258 = sphi 0, %s255
      %s259 = sphi 0, %s258
      %s275 = sphi 0, %s259
    $region4: #{_lambda_.1} parent=1 // loop_header_branch
      %28 = sbr.rel (%p26) target = $region8
    $region5: #{_lambda_.1} parent=1 // loop_body
      %s30 = ssub.s32 %s25, 1
      %s31 = ssub.s32 %s25, 2
      %s32 = sadd.s32 %s25, 1
      %s33 = ssub.s32 %s25, %s32
      %p34 = scmp.eq.s32.totalorder %s33, 0
      %s36 = sadd.s32 %s35, 1
      %s37 = scalar_select %p34, %s35, %s36
      %p40 = pneg %p34
      %p41 = scmp.eq.s32.totalorder %s25, 1
      %p42 = por %p40, %p41
      %p43 = scmp.ne.s32.totalorder %s35, %s38
      %p44 = scmp.eq.s32.totalorder %s25, 0
      %p45 = por %p43, %p44
      %p46 = scmp.ne.s32.totalorder %s35, %s38
      %p47 = scmp.eq.s32.totalorder %s30, 1
      %p48 = por %p46, %p47
      %p49 = scmp.ne.s32.totalorder %s38, %s39
      %p50 = scmp.eq.s32.totalorder %s30, 0
      %p51 = por %p49, %p50
      %p52 = scmp.ne.s32.totalorder %s38, %s39
      %p53 = scmp.eq.s32.totalorder %s31, 1
      %p54 = por %p52, %p53
      %p56 = scmp.ne.s32.totalorder %s39, %s55
      %p57 = scmp.eq.s32.totalorder %s31, 0
      %p58 = por %p56, %p57
      %s60 = sadd.s32 %s59, 1
      %p63 = scmp.eq.s32.totalorder %s25, 1
      %p64 = scmp.ne.s32.totalorder %s59, %s61
      %p65 = scmp.eq.s32.totalorder %s25, 0
      %p66 = por %p64, %p65
      %p67 = scmp.ne.s32.totalorder %s59, %s61
      %p68 = scmp.eq.s32.totalorder %s30, 1
      %p69 = por %p67, %p68
      %p70 = scmp.ne.s32.totalorder %s61, %s62
      %p71 = scmp.eq.s32.totalorder %s30, 0
      %p72 = por %p70, %p71
      %p73 = scmp.ne.s32.totalorder %s61, %s62
      %p74 = scmp.eq.s32.totalorder %s31, 1
      %p75 = por %p73, %p74
      %p77 = scmp.ne.s32.totalorder %s62, %s76
      %p78 = scmp.eq.s32.totalorder %s31, 0
      %p79 = por %p77, %p78
      %s81 = sadd.s32 %s80, 1
      %p84 = scmp.eq.s32.totalorder %s25, 1
      %p85 = scmp.ne.s32.totalorder %s80, %s82
      %p86 = scmp.eq.s32.totalorder %s25, 0
      %p87 = por %p85, %p86
      %p88 = scmp.ne.s32.totalorder %s80, %s82
      %p89 = scmp.eq.s32.totalorder %s30, 1
      %p90 = por %p88, %p89
      %p91 = scmp.ne.s32.totalorder %s82, %s83
      %p92 = scmp.eq.s32.totalorder %s30, 0
      %p93 = por %p91, %p92
      %p94 = scmp.ne.s32.totalorder %s82, %s83
      %p95 = scmp.eq.s32.totalorder %s31, 1
      %p96 = por %p94, %p95
      %p98 = scmp.ne.s32.totalorder %s83, %s97
      %p99 = scmp.eq.s32.totalorder %s31, 0
      %p100 = por %p98, %p99
      %s102 = sadd.s32 %s101, 1
      %p105 = scmp.eq.s32.totalorder %s25, 1
      %p106 = scmp.ne.s32.totalorder %s101, %s103
      %p107 = scmp.eq.s32.totalorder %s25, 0
      %p108 = por %p106, %p107
      %p109 = scmp.ne.s32.totalorder %s101, %s103
      %p110 = scmp.eq.s32.totalorder %s30, 1
      %p111 = por %p109, %p110
      %p112 = scmp.ne.s32.totalorder %s103, %s104
      %p113 = scmp.eq.s32.totalorder %s30, 0
      %p114 = por %p112, %p113
      %p115 = scmp.ne.s32.totalorder %s103, %s104
      %p116 = scmp.eq.s32.totalorder %s31, 1
      %p117 = por %p115, %p116
      %p119 = scmp.ne.s32.totalorder %s104, %s118
      %p120 = scmp.eq.s32.totalorder %s31, 0
      %p121 = por %p119, %p120
      %s123 = sadd.s32 %s122, 1
      %p126 = scmp.eq.s32.totalorder %s25, 1
      %p127 = scmp.ne.s32.totalorder %s122, %s124
      %p128 = scmp.eq.s32.totalorder %s25, 0
      %p129 = por %p127, %p128
      %p130 = scmp.ne.s32.totalorder %s122, %s124
      %p131 = scmp.eq.s32.totalorder %s30, 1
      %p132 = por %p130, %p131
      %p133 = scmp.ne.s32.totalorder %s124, %s125
      %p134 = scmp.eq.s32.totalorder %s30, 0
      %p135 = por %p133, %p134
      %p136 = scmp.ne.s32.totalorder %s124, %s125
      %p137 = scmp.eq.s32.totalorder %s31, 1
      %p138 = por %p136, %p137
      %p140 = scmp.ne.s32.totalorder %s125, %s139
      %p141 = scmp.eq.s32.totalorder %s31, 0
      %p142 = por %p140, %p141
      %s144 = sadd.s32 %s143, 1
      %p147 = scmp.eq.s32.totalorder %s25, 1
      %p148 = scmp.ne.s32.totalorder %s143, %s145
      %p149 = scmp.eq.s32.totalorder %s25, 0
      %p150 = por %p148, %p149
      %p151 = scmp.ne.s32.totalorder %s143, %s145
      %p152 = scmp.eq.s32.totalorder %s30, 1
      %p153 = por %p151, %p152
      %p154 = scmp.ne.s32.totalorder %s145, %s146
      %p155 = scmp.eq.s32.totalorder %s30, 0
      %p156 = por %p154, %p155
      %p157 = scmp.ne.s32.totalorder %s145, %s146
      %p158 = scmp.eq.s32.totalorder %s31, 1
      %p159 = por %p157, %p158
      %p161 = scmp.ne.s32.totalorder %s146, %s160
      %p162 = scmp.eq.s32.totalorder %s31, 0
      %p163 = por %p161, %p162
      %s165 = sadd.s32 %s164, 1
      %p168 = scmp.eq.s32.totalorder %s25, 1
      %p169 = scmp.ne.s32.totalorder %s164, %s166
      %p170 = scmp.eq.s32.totalorder %s25, 0
      %p171 = por %p169, %p170
      %p172 = scmp.ne.s32.totalorder %s164, %s166
      %p173 = scmp.eq.s32.totalorder %s30, 1
      %p174 = por %p172, %p173
      %p175 = scmp.ne.s32.totalorder %s166, %s167
      %p176 = scmp.eq.s32.totalorder %s30, 0
      %p177 = por %p175, %p176
      %p178 = scmp.ne.s32.totalorder %s166, %s167
      %p179 = scmp.eq.s32.totalorder %s31, 1
      %p180 = por %p178, %p179
      %p182 = scmp.ne.s32.totalorder %s167, %s181
      %p183 = scmp.eq.s32.totalorder %s31, 0
      %p184 = por %p182, %p183
      %s186 = sadd.s32 %s185, 1
      %p189 = scmp.eq.s32.totalorder %s25, 1
      %p190 = scmp.ne.s32.totalorder %s185, %s187
      %p191 = scmp.eq.s32.totalorder %s25, 0
      %p192 = por %p190, %p191
      %p193 = scmp.ne.s32.totalorder %s185, %s187
      %p194 = scmp.eq.s32.totalorder %s30, 1
      %p195 = por %p193, %p194
      %p196 = scmp.ne.s32.totalorder %s187, %s188
      %p197 = scmp.eq.s32.totalorder %s30, 0
      %p198 = por %p196, %p197
      %p199 = scmp.ne.s32.totalorder %s187, %s188
      %p200 = scmp.eq.s32.totalorder %s31, 1
      %p201 = por %p199, %p200
      %p203 = scmp.ne.s32.totalorder %s188, %s202
      %p204 = scmp.eq.s32.totalorder %s31, 0
      %p205 = por %p203, %p204
      %s207 = sadd.s32 %s206, 1
      %p210 = scmp.eq.s32.totalorder %s25, 1
      %p211 = scmp.ne.s32.totalorder %s206, %s208
      %p212 = scmp.eq.s32.totalorder %s25, 0
      %p213 = por %p211, %p212
      %p214 = scmp.ne.s32.totalorder %s206, %s208
      %p215 = scmp.eq.s32.totalorder %s30, 1
      %p216 = por %p214, %p215
      %p217 = scmp.ne.s32.totalorder %s208, %s209
      %p218 = scmp.eq.s32.totalorder %s30, 0
      %p219 = por %p217, %p218
      %p220 = scmp.ne.s32.totalorder %s208, %s209
      %p221 = scmp.eq.s32.totalorder %s31, 1
      %p222 = por %p220, %p221
      %p224 = scmp.ne.s32.totalorder %s209, %s223
      %p225 = scmp.eq.s32.totalorder %s31, 0
      %p226 = por %p224, %p225
      %s227 = ssub.s32 %s25, %s32
      %p228 = scmp.eq.s32.totalorder %s227, 0
      %s230 = sadd.s32 %s229, 1
      %s231 = scalar_select %p228, %s229, %s230
      %p234 = pneg %p228
      %p235 = scmp.eq.s32.totalorder %s25, 1
      %p236 = por %p234, %p235
      %p237 = scmp.ne.s32.totalorder %s229, %s232
      %p238 = scmp.eq.s32.totalorder %s25, 0
      %p239 = por %p237, %p238
      %p240 = scmp.ne.s32.totalorder %s229, %s232
      %p241 = scmp.eq.s32.totalorder %s30, 1
      %p242 = por %p240, %p241
      %p243 = scmp.ne.s32.totalorder %s232, %s233
      %p244 = scmp.eq.s32.totalorder %s30, 0
      %p245 = por %p243, %p244
      %p246 = scmp.ne.s32.totalorder %s232, %s233
      %p247 = scmp.eq.s32.totalorder %s31, 1
      %p248 = por %p246, %p247
      %p250 = scmp.ne.s32.totalorder %s233, %s249
      %p251 = scmp.eq.s32.totalorder %s31, 0
      %p252 = por %p250, %p251
      %s253 = ssub.s32 %s25, %s32
      %p254 = scmp.eq.s32.totalorder %s253, 0
      %s256 = sadd.s32 %s255, 1
      %s257 = scalar_select %p254, %s255, %s256
      %p260 = pneg %p254
      %p261 = scmp.eq.s32.totalorder %s25, 1
      %p262 = por %p260, %p261
      %p263 = scmp.ne.s32.totalorder %s255, %s258
      %p264 = scmp.eq.s32.totalorder %s25, 0
      %p265 = por %p263, %p264
      %p266 = scmp.ne.s32.totalorder %s255, %s258
      %p267 = scmp.eq.s32.totalorder %s30, 1
      %p268 = por %p266, %p267
      %p269 = scmp.ne.s32.totalorder %s258, %s259
      %p270 = scmp.eq.s32.totalorder %s30, 0
      %p271 = por %p269, %p270
      %p272 = scmp.ne.s32.totalorder %s258, %s259
      %p273 = scmp.eq.s32.totalorder %s31, 1
      %p274 = por %p272, %p273
      %p276 = scmp.ne.s32.totalorder %s259, %s275
      %p277 = scmp.eq.s32.totalorder %s31, 0
      %p278 = por %p276, %p277
      %p279 = scmp.le.s32.totalorder 1, %s25
      %p280 = scmp.lt.s32.totalorder %s25, 3
      %p281 = pnand %p279, %p280
      %p282 = pneg %p281
      // Predicated region
      $region9: #{_lambda_.1} parent=5 // pred_check
        _
      $region10: #{_lambda_.1} parent=5 // pred_check_branch
        %284 = sbr.rel (%p281) target = $region12
      $region11: #{_lambda_.1} parent=5 // pred_region
        %s285 = ssub.s32 %s25, 1
        // Predicated region
        $region13: #{_lambda_.1} parent=11 // pred_check
          %p286 = pneg %p72
        $region14: #{_lambda_.1} parent=11 // pred_check_branch
          %288 = sbr.rel (%p286) target = $region16
        $region15: #{_lambda_.1} parent=11 // pred_region
          %s290 = ssub.s32 1024, 1024
          %291 = vsyncadd [#allocation6], %s290
          %s292 = sshll.u32 [#allocation5], 4
          %s293 = int_to_ptr.vmem [resolvable:$true] %s292
          %298 = dma.hbm_to_vmem [thread:$0]  %s1, 1024, %s293, [#allocation6], 64, 64, 4
        $region16: #{_lambda_.1} parent=11 // pred_fallthru
          _
        // Predicated region
        $region17: #{_lambda_.1} parent=11 // pred_check
          %p299 = pneg %p93
        $region18: #{_lambda_.1} parent=11 // pred_check_branch
          %301 = sbr.rel (%p299) target = $region20
        $region19: #{_lambda_.1} parent=11 // pred_region
          _
        $region20: #{_lambda_.1} parent=11 // pred_fallthru
          _
        // Predicated region
        $region21: #{_lambda_.1} parent=11 // pred_check
          %p302 = pneg %p114
        $region22: #{_lambda_.1} parent=11 // pred_check_branch
          %304 = sbr.rel (%p302) target = $region24
        $region23: #{_lambda_.1} parent=11 // pred_region
          %s306 = ssub.s32 1024, 1024
          %307 = vsyncadd [#allocation6], %s306
          %s308 = sshll.u32 [#allocation7], 4
          %s309 = int_to_ptr.vmem [resolvable:$true] %s308
          %314 = dma.hbm_to_vmem [thread:$0]  %s3, 1024, %s309, [#allocation6], 64, 64, 4
        $region24: #{_lambda_.1} parent=11 // pred_fallthru
          _
        // Predicated region
        $region25: #{_lambda_.1} parent=11 // pred_check
          %p315 = pneg %p135
        $region26: #{_lambda_.1} parent=11 // pred_check_branch
          %317 = sbr.rel (%p315) target = $region28
        $region27: #{_lambda_.1} parent=11 // pred_region
          _
        $region28: #{_lambda_.1} parent=11 // pred_fallthru
          _
        // Predicated region
        $region29: #{_lambda_.1} parent=11 // pred_check
          %p318 = pneg %p156
        $region30: #{_lambda_.1} parent=11 // pred_check_branch
          %320 = sbr.rel (%p318) target = $region32
        $region31: #{_lambda_.1} parent=11 // pred_region
          %s322 = ssub.s32 1024, 1024
          %323 = vsyncadd [#allocation9], %s322
          %s324 = sshll.u32 [#allocation8], 4
          %s325 = int_to_ptr.vmem [resolvable:$true] %s324
          %330 = dma.hbm_to_vmem [thread:$0]  %s5, 1024, %s325, [#allocation9], 64, 64, 4
        $region32: #{_lambda_.1} parent=11 // pred_fallthru
          _
        // Predicated region
        $region33: #{_lambda_.1} parent=11 // pred_check
          %p331 = pneg %p177
        $region34: #{_lambda_.1} parent=11 // pred_check_branch
          %333 = sbr.rel (%p331) target = $region36
        $region35: #{_lambda_.1} parent=11 // pred_region
          _
        $region36: #{_lambda_.1} parent=11 // pred_fallthru
          _
        // Predicated region
        $region37: #{_lambda_.1} parent=11 // pred_check
          %p334 = pneg %p198
        $region38: #{_lambda_.1} parent=11 // pred_check_branch
          %336 = sbr.rel (%p334) target = $region40
        $region39: #{_lambda_.1} parent=11 // pred_region
          %s338 = ssub.s32 1024, 1024
          %339 = vsyncadd [#allocation9], %s338
          %s340 = sshll.u32 [#allocation10], 4
          %s341 = int_to_ptr.vmem [resolvable:$true] %s340
          %346 = dma.hbm_to_vmem [thread:$0]  %s7, 1024, %s341, [#allocation9], 64, 64, 4
        $region40: #{_lambda_.1} parent=11 // pred_fallthru
          _
        // Predicated region
        $region41: #{_lambda_.1} parent=11 // pred_check
          %p347 = pneg %p219
        $region42: #{_lambda_.1} parent=11 // pred_check_branch
          %349 = sbr.rel (%p347) target = $region44
        $region43: #{_lambda_.1} parent=11 // pred_region
          _
        $region44: #{_lambda_.1} parent=11 // pred_fallthru
          _
      $region12: #{_lambda_.1} parent=5 // pred_fallthru
        _
      %p350 = scmp.lt.s32.totalorder %s25, 2
      // Predicated region
      $region45: #{_lambda_.1} parent=5 // pred_check
        %p351 = pneg %p350
      $region46: #{_lambda_.1} parent=5 // pred_check_branch
        %353 = sbr.rel (%p351) target = $region48
      $region47: #{_lambda_.1} parent=5 // pred_region
        // Predicated region
        $region49: #{_lambda_.1} parent=47 // pred_check
          %p354 = pneg %p45
        $region50: #{_lambda_.1} parent=47 // pred_check_branch
          %356 = sbr.rel (%p354) target = $region52
        $region51: #{_lambda_.1} parent=47 // pred_region
          %s357 = sand.u32 %s35, 1
          %s358 = scalar_lea.sflag [#allocation3], %s357
          %s359 = sand.u32 %s35, 1
          %s360 = smul.addr %s359, 128
          %s361 = scalar_lea.vmem [#allocation2], %s360
          %s362 = smul.u32 16, %s25
          %s364 = ssub.s32 2048, 2048
          %365 = vsyncadd %s358, %s364
          %s366 = smul.addr %s362, 128
          %s367 = scalar_lea.hbm %s0, %s366
          %s368 = sshll.u32 %s361, 4
          %s369 = int_to_ptr.vmem [resolvable:$true] %s368
          %374 = dma.hbm_to_vmem [thread:$0]  %s367, 2048, %s369, %s358, 128, 128, 8
        $region52: #{_lambda_.1} parent=47 // pred_fallthru
          _
      $region48: #{_lambda_.1} parent=5 // pred_fallthru
        _
      %p375 = scmp.le.s32.totalorder 1, %s25
      %p376 = scmp.lt.s32.totalorder %s25, 3
      %p377 = pnand %p375, %p376
      %p378 = pneg %p377
      // Predicated region
      $region53: #{_lambda_.1} parent=5 // pred_check
        _
      $region54: #{_lambda_.1} parent=5 // pred_check_branch
        %380 = sbr.rel (%p377) target = $region56
      $region55: #{_lambda_.1} parent=5 // pred_region
        %s381 = ssub.s32 %s25, 1
        %s382 = sand.u32 %s38, 1
        %s383 = scalar_lea.sflag [#allocation3], %s382
        %s384 = sand.u32 %s38, 1
        %s385 = smul.addr %s384, 128
        %s386 = scalar_lea.vmem [#allocation2], %s385
        // Predicated region
        $region57: #{_lambda_.1} parent=55 // pred_check
          %p387 = pneg %p51
        $region58: #{_lambda_.1} parent=55 // pred_check_branch
          %389 = sbr.rel (%p387) target = $region60
        $region59: #{_lambda_.1} parent=55 // pred_region
          %390 = dma.done %s383, 2048
        $region60: #{_lambda_.1} parent=55 // pred_fallthru
          _
        // Predicated region
        $region61: #{_lambda_.1} parent=55 // pred_check
          %p391 = pneg %p72
        $region62: #{_lambda_.1} parent=55 // pred_check_branch
          %393 = sbr.rel (%p391) target = $region64
        $region63: #{_lambda_.1} parent=55 // pred_region
          %394 = dma.done [#allocation6], 1024
        $region64: #{_lambda_.1} parent=55 // pred_fallthru
          _
        // Predicated region
        $region65: #{_lambda_.1} parent=55 // pred_check
          %p395 = pneg %p114
        $region66: #{_lambda_.1} parent=55 // pred_check_branch
          %397 = sbr.rel (%p395) target = $region68
        $region67: #{_lambda_.1} parent=55 // pred_region
          %398 = dma.done [#allocation6], 1024
        $region68: #{_lambda_.1} parent=55 // pred_fallthru
          _
        // Predicated region
        $region69: #{_lambda_.1} parent=55 // pred_check
          %p399 = pneg %p156
        $region70: #{_lambda_.1} parent=55 // pred_check_branch
          %401 = sbr.rel (%p399) target = $region72
        $region71: #{_lambda_.1} parent=55 // pred_region
          %402 = dma.done [#allocation9], 1024
        $region72: #{_lambda_.1} parent=55 // pred_fallthru
          _
        // Predicated region
        $region73: #{_lambda_.1} parent=55 // pred_check
          %p403 = pneg %p198
        $region74: #{_lambda_.1} parent=55 // pred_check_branch
          %405 = sbr.rel (%p403) target = $region76
        $region75: #{_lambda_.1} parent=55 // pred_region
          %406 = dma.done [#allocation9], 1024
        $region76: #{_lambda_.1} parent=55 // pred_fallthru
          _
        %s407 = sand.u32 %s38, 1
        %s408 = scalar_lea.sflag [#allocation3], %s407
        %s409 = sand.u32 %s38, 1
        %s410 = smul.addr %s409, 128
        %s411 = scalar_lea.vmem [#allocation2], %s410
        %p412 = pneg %p51
        %p413 = pneg %p48
        %p414 = pneg %p72
        %p415 = pneg %p69
        %p416 = pneg %p93
        %p417 = pneg %p90
        %p418 = pneg %p114
        %p419 = pneg %p111
        %p420 = pneg %p135
        %p421 = pneg %p132
        %p422 = pneg %p156
        %p423 = pneg %p153
        %p424 = pneg %p177
        %p425 = pneg %p174
        %p426 = pneg %p198
        %p427 = pneg %p195
        %p428 = pneg %p219
        %p429 = pneg %p216
        %p430 = pneg %p245
        %p431 = pneg %p242
        %s432 = sand.u32 %s232, 1
        %s433 = scalar_lea.sflag [#allocation4], %s432
        %s434 = sand.u32 %s232, 1
        %s435 = smul.addr %s434, 128
        %s436 = scalar_lea.vmem [#allocation11], %s435
        %p437 = pneg %p271
        %p438 = pneg %p268
        %s439 = smul.u32 16, %s30
        %p440 = scmp.lt.s32.totalorder %s439, 31
        %s441 = scalar_select %p440, %s439, 31
        %s442 = smul.addr %s441, 8
        %s443 = scalar_lea.vmem %s10, %s442
        %s444 = smul.u32 16, %s30
        %s445 = smul.u32 16, %s30
        %s446 = smul.u32 16, %s30
        %p447 = scmp.lt.s32.totalorder %s446, 31
        %s448 = scalar_select %p447, %s446, 31
        %s449 = smul.addr %s448, 8
        %s450 = scalar_lea.vmem %s10, %s449
        %s451 = smul.u32 16, %s30
        %v453 = vld [vmem:[%s386] sm:$0xff]
        %v454 = vld [vmem:[%s386 + $0x8] sm:$0xff]
        %v455 = vld [vmem:[%s386 + $0x10] sm:$0xff]
        %v456 = vld [vmem:[%s386 + $0x18] sm:$0xff]
        %v457 = vld [vmem:[%s386 + $0x20] sm:$0xff]
        %v458 = vld [vmem:[%s386 + $0x28] sm:$0xff]
        %v459 = vld [vmem:[%s386 + $0x30] sm:$0xff]
        %v460 = vld [vmem:[%s386 + $0x38] sm:$0xff]
        %v461 = vld [vmem:[%s386 + $0x40] sm:$0xff]
        %v462 = vld [vmem:[%s386 + $0x48] sm:$0xff]
        %v463 = vld [vmem:[%s386 + $0x50] sm:$0xff]
        %v464 = vld [vmem:[%s386 + $0x58] sm:$0xff]
        %v465 = vld [vmem:[%s386 + $0x60] sm:$0xff]
        %v466 = vld [vmem:[%s386 + $0x68] sm:$0xff]
        %v467 = vld [vmem:[%s386 + $0x70] sm:$0xff]
        %v468 = vld [vmem:[%s386 + $0x78] sm:$0xff]
        %v469 = vpack.c.bf16 %v454, %v453
        %v470 = vpack.c.bf16 %v456, %v455
        %v471 = vpack.c.bf16 %v458, %v457
        %v472 = vpack.c.bf16 %v460, %v459
        %v473 = vpack.c.bf16 %v462, %v461
        %v474 = vpack.c.bf16 %v464, %v463
        %v475 = vpack.c.bf16 %v466, %v465
        %v476 = vpack.c.bf16 %v468, %v467
        %v477 = vld [vmem:[#allocation5] sm:$0xf]
        %v478 = vld [vmem:[#allocation5 + $0x4] sm:$0xf]
        %v479 = vld [vmem:[#allocation5 + $0x8] sm:$0xf]
        %v480 = vld [vmem:[#allocation5 + $0xc] sm:$0xf]
        %v481 = vld [vmem:[#allocation5 + $0x10] sm:$0xf]
        %v482 = vld [vmem:[#allocation5 + $0x14] sm:$0xf]
        %v483 = vld [vmem:[#allocation5 + $0x18] sm:$0xf]
        %v484 = vld [vmem:[#allocation5 + $0x1c] sm:$0xf]
        %v485 = vld [vmem:[#allocation5 + $0x20] sm:$0xf]
        %v486 = vld [vmem:[#allocation5 + $0x24] sm:$0xf]
        %v487 = vld [vmem:[#allocation5 + $0x28] sm:$0xf]
        %v488 = vld [vmem:[#allocation5 + $0x2c] sm:$0xf]
        %v489 = vld [vmem:[#allocation5 + $0x30] sm:$0xf]
        %v490 = vld [vmem:[#allocation5 + $0x34] sm:$0xf]
        %v491 = vld [vmem:[#allocation5 + $0x38] sm:$0xf]
        %v492 = vld [vmem:[#allocation5 + $0x3c] sm:$0xf]
        %v493 = vld [vmem:[%s2] sm:$0x1]
        %v495 = vlaneseq
        %v496 = vshrl.u32 %v495, 7
        %v497 = vsub.s32 0, %v496
        %v498 = vrot.slane %v493, %v497
        %v516 = vunpack.c.l.b16 %v477
        %v517 = vunpack.c.l.b16 %v478
        %v518 = vunpack.c.l.b16 %v479
        %v519 = vunpack.c.l.b16 %v480
        %v520 = vunpack.c.l.b16 %v481
        %v521 = vunpack.c.l.b16 %v482
        %v522 = vunpack.c.l.b16 %v483
        %v523 = vunpack.c.l.b16 %v484
        %v524 = vunpack.c.l.b16 %v485
        %v525 = vunpack.c.l.b16 %v486
        %v526 = vunpack.c.l.b16 %v487
        %v527 = vunpack.c.l.b16 %v488
        %v528 = vunpack.c.l.b16 %v489
        %v529 = vunpack.c.l.b16 %v490
        %v530 = vunpack.c.l.b16 %v491
        %v531 = vunpack.c.l.b16 %v492
        %v532 = vpack.c.b16 %v517, %v516
        %v533 = vpack.c.b16 %v519, %v518
        %v534 = vpack.c.b16 %v521, %v520
        %v535 = vpack.c.b16 %v523, %v522
        %v536 = vpack.c.b16 %v525, %v524
        %v537 = vpack.c.b16 %v527, %v526
        %v538 = vpack.c.b16 %v529, %v528
        %v539 = vpack.c.b16 %v531, %v530
        %548 = vmatprep.subr.bf16.mxu0 0
        %549 = vmatpush1.bf16.msra.mxu0 %v532
        %550 = vmatprep.subr.bf16.mxu0 0
        %551 = vmatpush1.bf16.msra.mxu0 %v533
        %552 = vmatprep.subr.bf16.mxu0 0
        %553 = vmatpush1.bf16.msra.mxu0 %v534
        %554 = vmatprep.subr.bf16.mxu0 0
        %555 = vmatpush1.bf16.msra.mxu0 %v535
        %556 = vmatprep.subr.bf16.mxu0 0
        %557 = vmatpush1.bf16.msra.mxu0 %v536
        %558 = vmatprep.subr.bf16.mxu0 0
        %559 = vmatpush1.bf16.msra.mxu0 %v537
        %560 = vmatprep.subr.bf16.mxu0 0
        %561 = vmatpush1.bf16.msra.mxu0 %v538
        %562 = vmatprep.subr.bf16.mxu0 0
        %563 = vmatpush1.bf16.msra.mxu0 %v539
        %564 = vmatprep.subr.bf16.mxu0 0
        %565 = vmatpush1.bf16.msra.mxu0 0
        %566 = vmatprep.subr.bf16.mxu0 0
        %567 = vmatpush1.bf16.msra.mxu0 0
        %568 = vmatprep.subr.bf16.mxu0 0
        %569 = vmatpush1.bf16.msra.mxu0 0
        %570 = vmatprep.subr.bf16.mxu0 0
        %571 = vmatpush1.bf16.msra.mxu0 0
        %572 = vmatprep.subr.bf16.mxu0 0
        %573 = vmatpush1.bf16.msra.mxu0 0
        %574 = vmatprep.subr.bf16.mxu0 0
        %575 = vmatpush1.bf16.msra.mxu0 0
        %576 = vmatprep.subr.bf16.mxu0 0
        %577 = vmatpush1.bf16.msra.mxu0 0
        %578 = vmatprep.subr.bf16.mxu0 0
        %579 = vmatpush1.bf16.msra.mxu0 0
        %580 = vmatprep.mubr.bf16.mxu0 0
        %581 = vmatmul.mubr.bf16.gmra.mrb[0].mxu0 %v469
        %v582 = vpop.f32.mrb[0].mxu0
        %v583 = vadd.f32 %v498, %v582
        %v584 = vpop.f32.mrb[0].mxu0
        %v585 = vpop.f32.mrb[0].mxu0
        %v586 = vadd.f32 %v498, %v585
        %v587 = vpop.f32.mrb[0].mxu0
        %588 = vmatprep.mubr.bf16.mxu0 0
        %589 = vmatmul.mubr.bf16.gmra.mrb[0].mxu0 %v470
        %v590 = vpop.f32.mrb[0].mxu0
        %v591 = vadd.f32 %v498, %v590
        %v592 = vpop.f32.mrb[0].mxu0
        %v593 = vpop.f32.mrb[0].mxu0
        %v594 = vadd.f32 %v498, %v593
        %v595 = vpop.f32.mrb[0].mxu0
        %596 = vmatprep.mubr.bf16.mxu0 0
        %597 = vmatmul.mubr.bf16.gmra.mrb[0].mxu0 %v471
        %v598 = vpop.f32.mrb[0].mxu0
        %v599 = vadd.f32 %v498, %v598
        %v600 = vpop.f32.mrb[0].mxu0
        %v601 = vpop.f32.mrb[0].mxu0
        %v602 = vadd.f32 %v498, %v601
        %v603 = vpop.f32.mrb[0].mxu0
        %604 = vmatprep.mubr.bf16.mxu0 0
        %605 = vmatmul.mubr.bf16.gmra.mrb[0].mxu0 %v472
        %v606 = vpop.f32.mrb[0].mxu0
        %v607 = vadd.f32 %v498, %v606
        %v608 = vpop.f32.mrb[0].mxu0
        %v609 = vpop.f32.mrb[0].mxu0
        %v610 = vadd.f32 %v498, %v609
        %v611 = vpop.f32.mrb[0].mxu0
        %612 = vmatprep.mubr.bf16.mxu0 0
        %613 = vmatmul.mubr.bf16.gmra.mrb[0].mxu0 %v473
        %v614 = vpop.f32.mrb[0].mxu0
        %v615 = vadd.f32 %v498, %v614
        %v616 = vpop.f32.mrb[0].mxu0
        %v617 = vpop.f32.mrb[0].mxu0
        %v618 = vadd.f32 %v498, %v617
        %v619 = vpop.f32.mrb[0].mxu0
        %620 = vmatprep.mubr.bf16.mxu0 0
        %621 = vmatmul.mubr.bf16.gmra.mrb[0].mxu0 %v474
        %v622 = vpop.f32.mrb[0].mxu0
        %v623 = vadd.f32 %v498, %v622
        %v624 = vpop.f32.mrb[0].mxu0
        %v625 = vpop.f32.mrb[0].mxu0
        %v626 = vadd.f32 %v498, %v625
        %v627 = vpop.f32.mrb[0].mxu0
        %628 = vmatprep.mubr.bf16.mxu0 0
        %629 = vmatmul.mubr.bf16.gmra.mrb[0].mxu0 %v475
        %v630 = vpop.f32.mrb[0].mxu0
        %v631 = vadd.f32 %v498, %v630
        %v632 = vpop.f32.mrb[0].mxu0
        %v633 = vpop.f32.mrb[0].mxu0
        %v634 = vadd.f32 %v498, %v633
        %v635 = vpop.f32.mrb[0].mxu0
        %636 = vmatprep.mubr.bf16.mxu0 0
        %637 = vmatmul.mubr.bf16.gmra.mrb[0].mxu0 %v476
        %v638 = vpop.f32.mrb[0].mxu0
        %v639 = vadd.f32 %v498, %v638
        %v640 = vpop.f32.mrb[0].mxu0
        %v641 = vpop.f32.mrb[0].mxu0
        %v642 = vadd.f32 %v498, %v641
        %v643 = vpop.f32.mrb[0].mxu0
        %644 = vdwg.mxu0
        %v645 = vmax.f32 %v583, 0.0
        %v646 = vmax.f32 %v586, 0.0
        %v647 = vmax.f32 %v591, 0.0
        %v648 = vmax.f32 %v594, 0.0
        %v649 = vmax.f32 %v599, 0.0
        %v650 = vmax.f32 %v602, 0.0
        %v651 = vmax.f32 %v607, 0.0
        %v652 = vmax.f32 %v610, 0.0
        %v653 = vmax.f32 %v615, 0.0
        %v654 = vmax.f32 %v618, 0.0
        %v655 = vmax.f32 %v623, 0.0
        %v656 = vmax.f32 %v626, 0.0
        %v657 = vmax.f32 %v631, 0.0
        %v658 = vmax.f32 %v634, 0.0
        %v659 = vmax.f32 %v639, 0.0
        %v660 = vmax.f32 %v642, 0.0
        %v661 = vpack.c.bf16 %v646, %v645
        %v662 = vpack.c.bf16 %v648, %v647
        %v663 = vpack.c.bf16 %v650, %v649
        %v664 = vpack.c.bf16 %v652, %v651
        %v665 = vpack.c.bf16 %v654, %v653
        %v666 = vpack.c.bf16 %v656, %v655
        %v667 = vpack.c.bf16 %v658, %v657
        %v668 = vpack.c.bf16 %v660, %v659
        %v669 = vld [vmem:[#allocation7] sm:$0xf]
        %v670 = vld [vmem:[#allocation7 + $0x4] sm:$0xf]
        %v671 = vld [vmem:[#allocation7 + $0x8] sm:$0xf]
        %v672 = vld [vmem:[#allocation7 + $0xc] sm:$0xf]
        %v673 = vld [vmem:[#allocation7 + $0x10] sm:$0xf]
        %v674 = vld [vmem:[#allocation7 + $0x14] sm:$0xf]
        %v675 = vld [vmem:[#allocation7 + $0x18] sm:$0xf]
        %v676 = vld [vmem:[#allocation7 + $0x1c] sm:$0xf]
        %v677 = vld [vmem:[#allocation7 + $0x20] sm:$0xf]
        %v678 = vld [vmem:[#allocation7 + $0x24] sm:$0xf]
        %v679 = vld [vmem:[#allocation7 + $0x28] sm:$0xf]
        %v680 = vld [vmem:[#allocation7 + $0x2c] sm:$0xf]
        %v681 = vld [vmem:[#allocation7 + $0x30] sm:$0xf]
        %v682 = vld [vmem:[#allocation7 + $0x34] sm:$0xf]
        %v683 = vld [vmem:[#allocation7 + $0x38] sm:$0xf]
        %v684 = vld [vmem:[#allocation7 + $0x3c] sm:$0xf]
        %v685 = vld [vmem:[%s4] sm:$0x1]
        %v687 = vlaneseq
        %v688 = vshrl.u32 %v687, 7
        %v689 = vsub.s32 0, %v688
        %v690 = vrot.slane %v685, %v689
        %v708 = vunpack.c.l.b16 %v669
        %v709 = vunpack.c.l.b16 %v670
        %v710 = vunpack.c.l.b16 %v671
        %v711 = vunpack.c.l.b16 %v672
        %v712 = vunpack.c.l.b16 %v673
        %v713 = vunpack.c.l.b16 %v674
        %v714 = vunpack.c.l.b16 %v675
        %v715 = vunpack.c.l.b16 %v676
        %v716 = vunpack.c.l.b16 %v677
        %v717 = vunpack.c.l.b16 %v678
        %v718 = vunpack.c.l.b16 %v679
        %v719 = vunpack.c.l.b16 %v680
        %v720 = vunpack.c.l.b16 %v681
        %v721 = vunpack.c.l.b16 %v682
        %v722 = vunpack.c.l.b16 %v683
        %v723 = vunpack.c.l.b16 %v684
        %v724 = vpack.c.b16 %v709, %v708
        %v725 = vpack.c.b16 %v711, %v710
        %v726 = vpack.c.b16 %v713, %v712
        %v727 = vpack.c.b16 %v715, %v714
        %v728 = vpack.c.b16 %v717, %v716
        %v729 = vpack.c.b16 %v719, %v718
        %v730 = vpack.c.b16 %v721, %v720
        %v731 = vpack.c.b16 %v723, %v722
        %740 = vmatprep.subr.bf16.mxu0 0
        %741 = vmatpush1.bf16.msra.mxu0 %v724
        %742 = vmatprep.subr.bf16.mxu0 0
        %743 = vmatpush1.bf16.msra.mxu0 %v725
        %744 = vmatprep.subr.bf16.mxu0 0
        %745 = vmatpush1.bf16.msra.mxu0 %v726
        %746 = vmatprep.subr.bf16.mxu0 0
        %747 = vmatpush1.bf16.msra.mxu0 %v727
        %748 = vmatprep.subr.bf16.mxu0 0
        %749 = vmatpush1.bf16.msra.mxu0 %v728
        %750 = vmatprep.subr.bf16.mxu0 0
        %751 = vmatpush1.bf16.msra.mxu0 %v729
        %752 = vmatprep.subr.bf16.mxu0 0
        %753 = vmatpush1.bf16.msra.mxu0 %v730
        %754 = vmatprep.subr.bf16.mxu0 0
        %755 = vmatpush1.bf16.msra.mxu0 %v731
        %756 = vmatprep.subr.bf16.mxu0 0
        %757 = vmatpush1.bf16.msra.mxu0 0
        %758 = vmatprep.subr.bf16.mxu0 0
        %759 = vmatpush1.bf16.msra.mxu0 0
        %760 = vmatprep.subr.bf16.mxu0 0
        %761 = vmatpush1.bf16.msra.mxu0 0
        %762 = vmatprep.subr.bf16.mxu0 0
        %763 = vmatpush1.bf16.msra.mxu0 0
        %764 = vmatprep.subr.bf16.mxu0 0
        %765 = vmatpush1.bf16.msra.mxu0 0
        %766 = vmatprep.subr.bf16.mxu0 0
        %767 = vmatpush1.bf16.msra.mxu0 0
        %768 = vmatprep.subr.bf16.mxu0 0
        %769 = vmatpush1.bf16.msra.mxu0 0
        %770 = vmatprep.subr.bf16.mxu0 0
        %771 = vmatpush1.bf16.msra.mxu0 0
        %772 = vmatprep.mubr.bf16.mxu0 0
        %773 = vmatmul.mubr.bf16.gmra.mrb[0].mxu0 %v661
        %v774 = vpop.f32.mrb[0].mxu0
        %v775 = vadd.f32 %v690, %v774
        %v776 = vpop.f32.mrb[0].mxu0
        %v777 = vpop.f32.mrb[0].mxu0
        %v778 = vadd.f32 %v690, %v777
        %v779 = vpop.f32.mrb[0].mxu0
        %780 = vmatprep.mubr.bf16.mxu0 0
        %781 = vmatmul.mubr.bf16.gmra.mrb[0].mxu0 %v662
        %v782 = vpop.f32.mrb[0].mxu0
        %v783 = vadd.f32 %v690, %v782
        %v784 = vpop.f32.mrb[0].mxu0
        %v785 = vpop.f32.mrb[0].mxu0
        %v786 = vadd.f32 %v690, %v785
        %v787 = vpop.f32.mrb[0].mxu0
        %788 = vmatprep.mubr.bf16.mxu0 0
        %789 = vmatmul.mubr.bf16.gmra.mrb[0].mxu0 %v663
        %v790 = vpop.f32.mrb[0].mxu0
        %v791 = vadd.f32 %v690, %v790
        %v792 = vpop.f32.mrb[0].mxu0
        %v793 = vpop.f32.mrb[0].mxu0
        %v794 = vadd.f32 %v690, %v793
        %v795 = vpop.f32.mrb[0].mxu0
        %796 = vmatprep.mubr.bf16.mxu0 0
        %797 = vmatmul.mubr.bf16.gmra.mrb[0].mxu0 %v664
        %v798 = vpop.f32.mrb[0].mxu0
        %v799 = vadd.f32 %v690, %v798
        %v800 = vpop.f32.mrb[0].mxu0
        %v801 = vpop.f32.mrb[0].mxu0
        %v802 = vadd.f32 %v690, %v801
        %v803 = vpop.f32.mrb[0].mxu0
        %804 = vmatprep.mubr.bf16.mxu0 0
        %805 = vmatmul.mubr.bf16.gmra.mrb[0].mxu0 %v665
        %v806 = vpop.f32.mrb[0].mxu0
        %v807 = vadd.f32 %v690, %v806
        %v808 = vpop.f32.mrb[0].mxu0
        %v809 = vpop.f32.mrb[0].mxu0
        %v810 = vadd.f32 %v690, %v809
        %v811 = vpop.f32.mrb[0].mxu0
        %812 = vmatprep.mubr.bf16.mxu0 0
        %813 = vmatmul.mubr.bf16.gmra.mrb[0].mxu0 %v666
        %v814 = vpop.f32.mrb[0].mxu0
        %v815 = vadd.f32 %v690, %v814
        %v816 = vpop.f32.mrb[0].mxu0
        %v817 = vpop.f32.mrb[0].mxu0
        %v818 = vadd.f32 %v690, %v817
        %v819 = vpop.f32.mrb[0].mxu0
        %820 = vmatprep.mubr.bf16.mxu0 0
        %821 = vmatmul.mubr.bf16.gmra.mrb[0].mxu0 %v667
        %v822 = vpop.f32.mrb[0].mxu0
        %v823 = vadd.f32 %v690, %v822
        %v824 = vpop.f32.mrb[0].mxu0
        %v825 = vpop.f32.mrb[0].mxu0
        %v826 = vadd.f32 %v690, %v825
        %v827 = vpop.f32.mrb[0].mxu0
        %828 = vmatprep.mubr.bf16.mxu0 0
        %829 = vmatmul.mubr.bf16.gmra.mrb[0].mxu0 %v668
        %v830 = vpop.f32.mrb[0].mxu0
        %v831 = vadd.f32 %v690, %v830
        %v832 = vpop.f32.mrb[0].mxu0
        %v833 = vpop.f32.mrb[0].mxu0
        %v834 = vadd.f32 %v690, %v833
        %v835 = vpop.f32.mrb[0].mxu0
        %836 = vdwg.mxu0
        %v837 = vpack.c.bf16 %v778, %v775
        %v838 = vpack.c.bf16 %v786, %v783
        %v839 = vpack.c.bf16 %v794, %v791
        %v840 = vpack.c.bf16 %v802, %v799
        %v841 = vpack.c.bf16 %v810, %v807
        %v842 = vpack.c.bf16 %v818, %v815
        %v843 = vpack.c.bf16 %v826, %v823
        %v844 = vpack.c.bf16 %v834, %v831
        %v845 = vld [vmem:[#allocation8] sm:$0xf]
        %v846 = vld [vmem:[#allocation8 + $0x4] sm:$0xf]
        %v847 = vld [vmem:[#allocation8 + $0x8] sm:$0xf]
        %v848 = vld [vmem:[#allocation8 + $0xc] sm:$0xf]
        %v849 = vld [vmem:[#allocation8 + $0x10] sm:$0xf]
        %v850 = vld [vmem:[#allocation8 + $0x14] sm:$0xf]
        %v851 = vld [vmem:[#allocation8 + $0x18] sm:$0xf]
        %v852 = vld [vmem:[#allocation8 + $0x1c] sm:$0xf]
        %v853 = vld [vmem:[#allocation8 + $0x20] sm:$0xf]
        %v854 = vld [vmem:[#allocation8 + $0x24] sm:$0xf]
        %v855 = vld [vmem:[#allocation8 + $0x28] sm:$0xf]
        %v856 = vld [vmem:[#allocation8 + $0x2c] sm:$0xf]
        %v857 = vld [vmem:[#allocation8 + $0x30] sm:$0xf]
        %v858 = vld [vmem:[#allocation8 + $0x34] sm:$0xf]
        %v859 = vld [vmem:[#allocation8 + $0x38] sm:$0xf]
        %v860 = vld [vmem:[#allocation8 + $0x3c] sm:$0xf]
        %v861 = vld [vmem:[%s6] sm:$0x1]
        %v863 = vlaneseq
        %v864 = vshrl.u32 %v863, 7
        %v865 = vsub.s32 0, %v864
        %v866 = vrot.slane %v861, %v865
        %v884 = vunpack.c.l.b16 %v845
        %v885 = vunpack.c.l.b16 %v846
        %v886 = vunpack.c.l.b16 %v847
        %v887 = vunpack.c.l.b16 %v848
        %v888 = vunpack.c.l.b16 %v849
        %v889 = vunpack.c.l.b16 %v850
        %v890 = vunpack.c.l.b16 %v851
        %v891 = vunpack.c.l.b16 %v852
        %v892 = vunpack.c.l.b16 %v853
        %v893 = vunpack.c.l.b16 %v854
        %v894 = vunpack.c.l.b16 %v855
        %v895 = vunpack.c.l.b16 %v856
        %v896 = vunpack.c.l.b16 %v857
        %v897 = vunpack.c.l.b16 %v858
        %v898 = vunpack.c.l.b16 %v859
        %v899 = vunpack.c.l.b16 %v860
        %v900 = vpack.c.b16 %v885, %v884
        %v901 = vpack.c.b16 %v887, %v886
        %v902 = vpack.c.b16 %v889, %v888
        %v903 = vpack.c.b16 %v891, %v890
        %v904 = vpack.c.b16 %v893, %v892
        %v905 = vpack.c.b16 %v895, %v894
        %v906 = vpack.c.b16 %v897, %v896
        %v907 = vpack.c.b16 %v899, %v898
        %916 = vmatprep.subr.bf16.mxu0 0
        %917 = vmatpush1.bf16.msra.mxu0 %v900
        %918 = vmatprep.subr.bf16.mxu0 0
        %919 = vmatpush1.bf16.msra.mxu0 %v901
        %920 = vmatprep.subr.bf16.mxu0 0
        %921 = vmatpush1.bf16.msra.mxu0 %v902
        %922 = vmatprep.subr.bf16.mxu0 0
        %923 = vmatpush1.bf16.msra.mxu0 %v903
        %924 = vmatprep.subr.bf16.mxu0 0
        %925 = vmatpush1.bf16.msra.mxu0 %v904
        %926 = vmatprep.subr.bf16.mxu0 0
        %927 = vmatpush1.bf16.msra.mxu0 %v905
        %928 = vmatprep.subr.bf16.mxu0 0
        %929 = vmatpush1.bf16.msra.mxu0 %v906
        %930 = vmatprep.subr.bf16.mxu0 0
        %931 = vmatpush1.bf16.msra.mxu0 %v907
        %932 = vmatprep.subr.bf16.mxu0 0
        %933 = vmatpush1.bf16.msra.mxu0 0
        %934 = vmatprep.subr.bf16.mxu0 0
        %935 = vmatpush1.bf16.msra.mxu0 0
        %936 = vmatprep.subr.bf16.mxu0 0
        %937 = vmatpush1.bf16.msra.mxu0 0
        %938 = vmatprep.subr.bf16.mxu0 0
        %939 = vmatpush1.bf16.msra.mxu0 0
        %940 = vmatprep.subr.bf16.mxu0 0
        %941 = vmatpush1.bf16.msra.mxu0 0
        %942 = vmatprep.subr.bf16.mxu0 0
        %943 = vmatpush1.bf16.msra.mxu0 0
        %944 = vmatprep.subr.bf16.mxu0 0
        %945 = vmatpush1.bf16.msra.mxu0 0
        %946 = vmatprep.subr.bf16.mxu0 0
        %947 = vmatpush1.bf16.msra.mxu0 0
        %948 = vmatprep.mubr.bf16.mxu0 0
        %949 = vmatmul.mubr.bf16.gmra.mrb[0].mxu0 %v837
        %v950 = vpop.f32.mrb[0].mxu0
        %v951 = vadd.f32 %v866, %v950
        %v952 = vpop.f32.mrb[0].mxu0
        %v953 = vpop.f32.mrb[0].mxu0
        %v954 = vadd.f32 %v866, %v953
        %v955 = vpop.f32.mrb[0].mxu0
        %956 = vmatprep.mubr.bf16.mxu0 0
        %957 = vmatmul.mubr.bf16.gmra.mrb[0].mxu0 %v838
        %v958 = vpop.f32.mrb[0].mxu0
        %v959 = vadd.f32 %v866, %v958
        %v960 = vpop.f32.mrb[0].mxu0
        %v961 = vpop.f32.mrb[0].mxu0
        %v962 = vadd.f32 %v866, %v961
        %v963 = vpop.f32.mrb[0].mxu0
        %964 = vmatprep.mubr.bf16.mxu0 0
        %965 = vmatmul.mubr.bf16.gmra.mrb[0].mxu0 %v839
        %v966 = vpop.f32.mrb[0].mxu0
        %v967 = vadd.f32 %v866, %v966
        %v968 = vpop.f32.mrb[0].mxu0
        %v969 = vpop.f32.mrb[0].mxu0
        %v970 = vadd.f32 %v866, %v969
        %v971 = vpop.f32.mrb[0].mxu0
        %972 = vmatprep.mubr.bf16.mxu0 0
        %973 = vmatmul.mubr.bf16.gmra.mrb[0].mxu0 %v840
        %v974 = vpop.f32.mrb[0].mxu0
        %v975 = vadd.f32 %v866, %v974
        %v976 = vpop.f32.mrb[0].mxu0
        %v977 = vpop.f32.mrb[0].mxu0
        %v978 = vadd.f32 %v866, %v977
        %v979 = vpop.f32.mrb[0].mxu0
        %980 = vmatprep.mubr.bf16.mxu0 0
        %981 = vmatmul.mubr.bf16.gmra.mrb[0].mxu0 %v841
        %v982 = vpop.f32.mrb[0].mxu0
        %v983 = vadd.f32 %v866, %v982
        %v984 = vpop.f32.mrb[0].mxu0
        %v985 = vpop.f32.mrb[0].mxu0
        %v986 = vadd.f32 %v866, %v985
        %v987 = vpop.f32.mrb[0].mxu0
        %988 = vmatprep.mubr.bf16.mxu0 0
        %989 = vmatmul.mubr.bf16.gmra.mrb[0].mxu0 %v842
        %v990 = vpop.f32.mrb[0].mxu0
        %v991 = vadd.f32 %v866, %v990
        %v992 = vpop.f32.mrb[0].mxu0
        %v993 = vpop.f32.mrb[0].mxu0
        %v994 = vadd.f32 %v866, %v993
        %v995 = vpop.f32.mrb[0].mxu0
        %996 = vmatprep.mubr.bf16.mxu0 0
        %997 = vmatmul.mubr.bf16.gmra.mrb[0].mxu0 %v843
        %v998 = vpop.f32.mrb[0].mxu0
        %v999 = vadd.f32 %v866, %v998
        %v1000 = vpop.f32.mrb[0].mxu0
        %v1001 = vpop.f32.mrb[0].mxu0
        %v1002 = vadd.f32 %v866, %v1001
        %v1003 = vpop.f32.mrb[0].mxu0
        %1004 = vmatprep.mubr.bf16.mxu0 0
        %1005 = vmatmul.mubr.bf16.gmra.mrb[0].mxu0 %v844
        %v1006 = vpop.f32.mrb[0].mxu0
        %v1007 = vadd.f32 %v866, %v1006
        %v1008 = vpop.f32.mrb[0].mxu0
        %v1009 = vpop.f32.mrb[0].mxu0
        %v1010 = vadd.f32 %v866, %v1009
        %v1011 = vpop.f32.mrb[0].mxu0
        %1012 = vdwg.mxu0
        %v1013 = vmax.f32 %v951, 0.0
        %v1014 = vmax.f32 %v954, 0.0
        %v1015 = vmax.f32 %v959, 0.0
        %v1016 = vmax.f32 %v962, 0.0
        %v1017 = vmax.f32 %v967, 0.0
        %v1018 = vmax.f32 %v970, 0.0
        %v1019 = vmax.f32 %v975, 0.0
        %v1020 = vmax.f32 %v978, 0.0
        %v1021 = vmax.f32 %v983, 0.0
        %v1022 = vmax.f32 %v986, 0.0
        %v1023 = vmax.f32 %v991, 0.0
        %v1024 = vmax.f32 %v994, 0.0
        %v1025 = vmax.f32 %v999, 0.0
        %v1026 = vmax.f32 %v1002, 0.0
        %v1027 = vmax.f32 %v1007, 0.0
        %v1028 = vmax.f32 %v1010, 0.0
        %v1029 = vpack.c.bf16 %v1014, %v1013
        %v1030 = vpack.c.bf16 %v1016, %v1015
        %v1031 = vpack.c.bf16 %v1018, %v1017
        %v1032 = vpack.c.bf16 %v1020, %v1019
        %v1033 = vpack.c.bf16 %v1022, %v1021
        %v1034 = vpack.c.bf16 %v1024, %v1023
        %v1035 = vpack.c.bf16 %v1026, %v1025
        %v1036 = vpack.c.bf16 %v1028, %v1027
        %v1037 = vld [vmem:[#allocation10] sm:$0xf]
        %v1038 = vld [vmem:[#allocation10 + $0x4] sm:$0xf]
        %v1039 = vld [vmem:[#allocation10 + $0x8] sm:$0xf]
        %v1040 = vld [vmem:[#allocation10 + $0xc] sm:$0xf]
        %v1041 = vld [vmem:[#allocation10 + $0x10] sm:$0xf]
        %v1042 = vld [vmem:[#allocation10 + $0x14] sm:$0xf]
        %v1043 = vld [vmem:[#allocation10 + $0x18] sm:$0xf]
        %v1044 = vld [vmem:[#allocation10 + $0x1c] sm:$0xf]
        %v1045 = vld [vmem:[#allocation10 + $0x20] sm:$0xf]
        %v1046 = vld [vmem:[#allocation10 + $0x24] sm:$0xf]
        %v1047 = vld [vmem:[#allocation10 + $0x28] sm:$0xf]
        %v1048 = vld [vmem:[#allocation10 + $0x2c] sm:$0xf]
        %v1049 = vld [vmem:[#allocation10 + $0x30] sm:$0xf]
        %v1050 = vld [vmem:[#allocation10 + $0x34] sm:$0xf]
        %v1051 = vld [vmem:[#allocation10 + $0x38] sm:$0xf]
        %v1052 = vld [vmem:[#allocation10 + $0x3c] sm:$0xf]
        %v1053 = vld [vmem:[%s8] sm:$0x1]
        %v1055 = vlaneseq
        %v1056 = vshrl.u32 %v1055, 7
        %v1057 = vsub.s32 0, %v1056
        %v1058 = vrot.slane %v1053, %v1057
        %v1076 = vunpack.c.l.b16 %v1037
        %v1077 = vunpack.c.l.b16 %v1038
        %v1078 = vunpack.c.l.b16 %v1039
        %v1079 = vunpack.c.l.b16 %v1040
        %v1080 = vunpack.c.l.b16 %v1041
        %v1081 = vunpack.c.l.b16 %v1042
        %v1082 = vunpack.c.l.b16 %v1043
        %v1083 = vunpack.c.l.b16 %v1044
        %v1084 = vunpack.c.l.b16 %v1045
        %v1085 = vunpack.c.l.b16 %v1046
        %v1086 = vunpack.c.l.b16 %v1047
        %v1087 = vunpack.c.l.b16 %v1048
        %v1088 = vunpack.c.l.b16 %v1049
        %v1089 = vunpack.c.l.b16 %v1050
        %v1090 = vunpack.c.l.b16 %v1051
        %v1091 = vunpack.c.l.b16 %v1052
        %v1092 = vpack.c.b16 %v1077, %v1076
        %v1093 = vpack.c.b16 %v1079, %v1078
        %v1094 = vpack.c.b16 %v1081, %v1080
        %v1095 = vpack.c.b16 %v1083, %v1082
        %v1096 = vpack.c.b16 %v1085, %v1084
        %v1097 = vpack.c.b16 %v1087, %v1086
        %v1098 = vpack.c.b16 %v1089, %v1088
        %v1099 = vpack.c.b16 %v1091, %v1090
        %1108 = vmatprep.subr.bf16.mxu0 0
        %1109 = vmatpush1.bf16.msra.mxu0 %v1092
        %1110 = vmatprep.subr.bf16.mxu0 0
        %1111 = vmatpush1.bf16.msra.mxu0 %v1093
        %1112 = vmatprep.subr.bf16.mxu0 0
        %1113 = vmatpush1.bf16.msra.mxu0 %v1094
        %1114 = vmatprep.subr.bf16.mxu0 0
        %1115 = vmatpush1.bf16.msra.mxu0 %v1095
        %1116 = vmatprep.subr.bf16.mxu0 0
        %1117 = vmatpush1.bf16.msra.mxu0 %v1096
        %1118 = vmatprep.subr.bf16.mxu0 0
        %1119 = vmatpush1.bf16.msra.mxu0 %v1097
        %1120 = vmatprep.subr.bf16.mxu0 0
        %1121 = vmatpush1.bf16.msra.mxu0 %v1098
        %1122 = vmatprep.subr.bf16.mxu0 0
        %1123 = vmatpush1.bf16.msra.mxu0 %v1099
        %1124 = vmatprep.subr.bf16.mxu0 0
        %1125 = vmatpush1.bf16.msra.mxu0 0
        %1126 = vmatprep.subr.bf16.mxu0 0
        %1127 = vmatpush1.bf16.msra.mxu0 0
        %1128 = vmatprep.subr.bf16.mxu0 0
        %1129 = vmatpush1.bf16.msra.mxu0 0
        %1130 = vmatprep.subr.bf16.mxu0 0
        %1131 = vmatpush1.bf16.msra.mxu0 0
        %1132 = vmatprep.subr.bf16.mxu0 0
        %1133 = vmatpush1.bf16.msra.mxu0 0
        %1134 = vmatprep.subr.bf16.mxu0 0
        %1135 = vmatpush1.bf16.msra.mxu0 0
        %1136 = vmatprep.subr.bf16.mxu0 0
        %1137 = vmatpush1.bf16.msra.mxu0 0
        %1138 = vmatprep.subr.bf16.mxu0 0
        %1139 = vmatpush1.bf16.msra.mxu0 0
        %1140 = vmatprep.mubr.bf16.mxu0 0
        %1141 = vmatmul.mubr.bf16.gmra.mrb[0].mxu0 %v1029
        %v1142 = vpop.f32.mrb[0].mxu0
        %v1143 = vadd.f32 %v1058, %v1142
        %v1144 = vpop.f32.mrb[0].mxu0
        %v1145 = vpop.f32.mrb[0].mxu0
        %v1146 = vadd.f32 %v1058, %v1145
        %v1147 = vpop.f32.mrb[0].mxu0
        %1148 = vmatprep.mubr.bf16.mxu0 0
        %1149 = vmatmul.mubr.bf16.gmra.mrb[0].mxu0 %v1030
        %v1150 = vpop.f32.mrb[0].mxu0
        %v1151 = vadd.f32 %v1058, %v1150
        %v1152 = vpop.f32.mrb[0].mxu0
        %v1153 = vpop.f32.mrb[0].mxu0
        %v1154 = vadd.f32 %v1058, %v1153
        %v1155 = vpop.f32.mrb[0].mxu0
        %1156 = vmatprep.mubr.bf16.mxu0 0
        %1157 = vmatmul.mubr.bf16.gmra.mrb[0].mxu0 %v1031
        %v1158 = vpop.f32.mrb[0].mxu0
        %v1159 = vadd.f32 %v1058, %v1158
        %v1160 = vpop.f32.mrb[0].mxu0
        %v1161 = vpop.f32.mrb[0].mxu0
        %v1162 = vadd.f32 %v1058, %v1161
        %v1163 = vpop.f32.mrb[0].mxu0
        %1164 = vmatprep.mubr.bf16.mxu0 0
        %1165 = vmatmul.mubr.bf16.gmra.mrb[0].mxu0 %v1032
        %v1166 = vpop.f32.mrb[0].mxu0
        %v1167 = vadd.f32 %v1058, %v1166
        %v1168 = vpop.f32.mrb[0].mxu0
        %v1169 = vpop.f32.mrb[0].mxu0
        %v1170 = vadd.f32 %v1058, %v1169
        %v1171 = vpop.f32.mrb[0].mxu0
        %1172 = vmatprep.mubr.bf16.mxu0 0
        %1173 = vmatmul.mubr.bf16.gmra.mrb[0].mxu0 %v1033
        %v1174 = vpop.f32.mrb[0].mxu0
        %v1175 = vadd.f32 %v1058, %v1174
        %v1176 = vpop.f32.mrb[0].mxu0
        %v1177 = vpop.f32.mrb[0].mxu0
        %v1178 = vadd.f32 %v1058, %v1177
        %v1179 = vpop.f32.mrb[0].mxu0
        %1180 = vmatprep.mubr.bf16.mxu0 0
        %1181 = vmatmul.mubr.bf16.gmra.mrb[0].mxu0 %v1034
        %v1182 = vpop.f32.mrb[0].mxu0
        %v1183 = vadd.f32 %v1058, %v1182
        %v1184 = vpop.f32.mrb[0].mxu0
        %v1185 = vpop.f32.mrb[0].mxu0
        %v1186 = vadd.f32 %v1058, %v1185
        %v1187 = vpop.f32.mrb[0].mxu0
        %1188 = vmatprep.mubr.bf16.mxu0 0
        %1189 = vmatmul.mubr.bf16.gmra.mrb[0].mxu0 %v1035
        %v1190 = vpop.f32.mrb[0].mxu0
        %v1191 = vadd.f32 %v1058, %v1190
        %v1192 = vpop.f32.mrb[0].mxu0
        %v1193 = vpop.f32.mrb[0].mxu0
        %v1194 = vadd.f32 %v1058, %v1193
        %v1195 = vpop.f32.mrb[0].mxu0
        %1196 = vmatprep.mubr.bf16.mxu0 0
        %1197 = vmatmul.mubr.bf16.gmra.mrb[0].mxu0 %v1036
        %v1198 = vpop.f32.mrb[0].mxu0
        %v1199 = vadd.f32 %v1058, %v1198
        %v1200 = vpop.f32.mrb[0].mxu0
        %v1201 = vpop.f32.mrb[0].mxu0
        %v1202 = vadd.f32 %v1058, %v1201
        %v1203 = vpop.f32.mrb[0].mxu0
        %1204 = vdwg.mxu0
        %1205 = vst [vmem:[%s450] sm:$0xff] %v775
        %1206 = vst [vmem:[%s450 + $0x8] sm:$0xff] %v778
        %1207 = vst [vmem:[%s450 + $0x10] sm:$0xff] %v783
        %1208 = vst [vmem:[%s450 + $0x18] sm:$0xff] %v786
        %1209 = vst [vmem:[%s450 + $0x20] sm:$0xff] %v791
        %1210 = vst [vmem:[%s450 + $0x28] sm:$0xff] %v794
        %1211 = vst [vmem:[%s450 + $0x30] sm:$0xff] %v799
        %1212 = vst [vmem:[%s450 + $0x38] sm:$0xff] %v802
        %1213 = vst [vmem:[%s450 + $0x40] sm:$0xff] %v807
        %1214 = vst [vmem:[%s450 + $0x48] sm:$0xff] %v810
        %1215 = vst [vmem:[%s450 + $0x50] sm:$0xff] %v815
        %1216 = vst [vmem:[%s450 + $0x58] sm:$0xff] %v818
        %1217 = vst [vmem:[%s450 + $0x60] sm:$0xff] %v823
        %1218 = vst [vmem:[%s450 + $0x68] sm:$0xff] %v826
        %1219 = vst [vmem:[%s450 + $0x70] sm:$0xff] %v831
        %1220 = vst [vmem:[%s450 + $0x78] sm:$0xff] %v834
        %1221 = vst [vmem:[%s436] sm:$0xff] %v1143
        %1222 = vst [vmem:[%s436 + $0x8] sm:$0xff] %v1146
        %1223 = vst [vmem:[%s436 + $0x10] sm:$0xff] %v1151
        %1224 = vst [vmem:[%s436 + $0x18] sm:$0xff] %v1154
        %1225 = vst [vmem:[%s436 + $0x20] sm:$0xff] %v1159
        %1226 = vst [vmem:[%s436 + $0x28] sm:$0xff] %v1162
        %1227 = vst [vmem:[%s436 + $0x30] sm:$0xff] %v1167
        %1228 = vst [vmem:[%s436 + $0x38] sm:$0xff] %v1170
        %1229 = vst [vmem:[%s436 + $0x40] sm:$0xff] %v1175
        %1230 = vst [vmem:[%s436 + $0x48] sm:$0xff] %v1178
        %1231 = vst [vmem:[%s436 + $0x50] sm:$0xff] %v1183
        %1232 = vst [vmem:[%s436 + $0x58] sm:$0xff] %v1186
        %1233 = vst [vmem:[%s436 + $0x60] sm:$0xff] %v1191
        %1234 = vst [vmem:[%s436 + $0x68] sm:$0xff] %v1194
        %1235 = vst [vmem:[%s436 + $0x70] sm:$0xff] %v1199
        %1236 = vst [vmem:[%s436 + $0x78] sm:$0xff] %v1202
        %s1237 = sand.u32 %s232, 1
        %s1238 = scalar_lea.sflag [#allocation4], %s1237
        %s1239 = sand.u32 %s232, 1
        %s1240 = smul.addr %s1239, 128
        %s1241 = scalar_lea.vmem [#allocation11], %s1240
        %s1242 = smul.u32 16, %s30
        %p1243 = scmp.lt.s32.totalorder %s1242, 31
        %s1244 = scalar_select %p1243, %s1242, 31
        %s1245 = smul.addr %s1244, 8
        %s1246 = scalar_lea.vmem %s10, %s1245
        // Predicated region
        $region77: #{_lambda_.1} parent=55 // pred_check
          %p1247 = pneg %p242
        $region78: #{_lambda_.1} parent=55 // pred_check_branch
          %1249 = sbr.rel (%p1247) target = $region80
        $region79: #{_lambda_.1} parent=55 // pred_region
          %s1250 = smul.u32 16, %s30
          %s1252 = ssub.s32 2048, 2048
          %1253 = vsyncadd %s1238, %s1252
          %s1254 = smul.addr %s1250, 128
          %s1255 = scalar_lea.hbm %s9, %s1254
          %s1256 = sshll.u32 %s1241, 4
          %s1257 = int_to_ptr.vmem [resolvable:$true] %s1256
          %1262 = dma.vmem_to_hbm [thread:$0]  %s1257, 2048, %s1255, %s1238, 128, 128, 8
        $region80: #{_lambda_.1} parent=55 // pred_fallthru
          _
        // Predicated region
        $region81: #{_lambda_.1} parent=55 // pred_check
          %p1263 = pneg %p268
        $region82: #{_lambda_.1} parent=55 // pred_check_branch
          %1265 = sbr.rel (%p1263) target = $region84
        $region83: #{_lambda_.1} parent=55 // pred_region
          %s1266 = smul.u32 16, %s30
        $region84: #{_lambda_.1} parent=55 // pred_fallthru
          _
      $region56: #{_lambda_.1} parent=5 // pred_fallthru
        _
      %p1267 = scmp.le.s32.totalorder 2, %s25
      // Predicated region
      $region85: #{_lambda_.1} parent=5 // pred_check
        %p1268 = pneg %p1267
      $region86: #{_lambda_.1} parent=5 // pred_check_branch
        %1270 = sbr.rel (%p1268) target = $region88
      $region87: #{_lambda_.1} parent=5 // pred_region
        %s1271 = ssub.s32 %s25, 2
        // Predicated region
        $region89: #{_lambda_.1} parent=87 // pred_check
          %p1272 = pneg %p248
        $region90: #{_lambda_.1} parent=87 // pred_check_branch
          %1274 = sbr.rel (%p1272) target = $region92
        $region91: #{_lambda_.1} parent=87 // pred_region
          %s1275 = sand.u32 %s233, 1
          %s1276 = scalar_lea.sflag [#allocation4], %s1275
          %s1277 = sand.u32 %s233, 1
          %s1278 = smul.addr %s1277, 128
          %s1279 = scalar_lea.vmem [#allocation11], %s1278
          %1280 = dma.done %s1276, 2048
        $region92: #{_lambda_.1} parent=87 // pred_fallthru
          _
        // Predicated region
        $region93: #{_lambda_.1} parent=87 // pred_check
          %p1281 = pneg %p274
        $region94: #{_lambda_.1} parent=87 // pred_check_branch
          %1283 = sbr.rel (%p1281) target = $region96
        $region95: #{_lambda_.1} parent=87 // pred_region
          %s1284 = smul.u32 16, %s31
          %p1285 = scmp.lt.s32.totalorder %s1284, 31
          %s1286 = scalar_select %p1285, %s1284, 31
          %s1287 = smul.addr %s1286, 8
          %s1288 = scalar_lea.vmem %s10, %s1287
        $region96: #{_lambda_.1} parent=87 // pred_fallthru
          _
      $region88: #{_lambda_.1} parent=5 // pred_fallthru
        _
    $region6: #{_lambda_.1} parent=1 // loop_footer
      %s29 = sadd.s32 1, %s25
    $region7: #{_lambda_.1} parent=1 // loop_footer_branch
      %24 = sbr.rel target = $region3
    $region8: #{_lambda_.1} parent=1 // loop_exit
      _
    %1289 = vsyncpa [#allocation3], 1
    %s1290 = scalar_lea.sflag [#allocation3], 1
    %1291 = vsyncpa %s1290, 1
    %1292 = vsyncpa [#allocation6], 1
    %1293 = vsyncpa [#allocation9], 1
    %1294 = vsyncpa [#allocation4], 1
    %s1295 = scalar_lea.sflag [#allocation4], 1
    %1296 = vsyncpa %s1295, 1

</llo_original>
